<compile_context>
chip_gen: v7x
topology: tpu7x:2x2x1
jax: 0.10.0
libtpu: 0.0.40
codegen_flags: <defaults>
</compile_context>

<pallas_src>
import functools
import math

import jax
import jax.numpy as jnp
from jax.experimental import pallas as pl
from jax.experimental.pallas import tpu as pltpu


def _round_up(v, m):
    return ((v + m - 1) // m) * m


# ------------------------------ Pallas kernel -------------------------------

def _residual_stack_kernel(x_ref, w1_ref, b1_ref, w2_ref, b2_ref, o_ref,
                           act_ref, zbuf_ref, *,
                           num_layers, R, W, C, Ch, ipb, guard, seg):
    """Fused ResidualStack for `ipb` images (rows = flattened H*W, lanes = C).

    act_ref  : (ipb*R, C) f32 -- un-ReLU'd activation, resident across layers.
    zbuf_ref : (guard + ipb*seg, 9*Ch) f32 -- per-layer conv3x3 partials
               Z = relu(act) @ W1cat, one guarded segment per image so
               vertically out-of-bounds taps read exact zeros.
    """
    # Stage the input block into the working activation buffer.
    for m in range(ipb):
        act_ref[pl.ds(m * R, R), :] = x_ref[m]

    # Guard rows must be exact zeros every grid step (VMEM scratch persists
    # across grid iterations and is NOT zero-initialized).
    zbuf_ref[...] = jnp.zeros_like(zbuf_ref)

    # Column-boundary masks, built in-kernel and hoisted out of the layer
    # loop.  A tap with dj=0 reads column j-1 (invalid at j==0); dj=2 reads
    # j+1 (invalid at j==W-1).  Vertical OOB is handled by zbuf guard rows.
    col = jax.lax.broadcasted_iota(jnp.int32, (R, Ch), 0) % W
    left_ok = col >= 1
    right_ok = col <= W - 2

    # num_layers is small -> static unroll.
    # TODO(synk): lax.fori_loop + dynamic weight indexing if L grows past ~4.
    for l in range(num_layers):
        # (1) One MXU dot for all 9 taps: (ipb*R, C) @ (C, 9*Ch).
        z_all = jnp.dot(jnp.maximum(act_ref[...], 0.0), w1_ref[l],
                        preferred_element_type=jnp.float32)

        # Scatter each image's Z into its zero-guarded segment of zbuf.
        for m in range(ipb):
            part = z_all if ipb == 1 else z_all[m * R:(m + 1) * R, :]
            zbuf_ref[pl.ds(guard + m * seg, R), :] = part

        # (2) Accumulate the 9 shifted tap blocks.
        hidden_parts = []
        for m in range(ipb):
            base = guard + m * seg
            h = None
            for t in range(9):
                di, dj = divmod(t, 3)
                row_off = base + (di - 1) * W + (dj - 1)
                # Full-lane load with a sublane shift, then a static lane
                # slice of the loaded value (tap block t).
                z_win = zbuf_ref[pl.ds(row_off, R), :]
                z_t = z_win[:, t * Ch:(t + 1) * Ch]
                if dj == 0:
                    z_t = jnp.where(left_ok, z_t, 0.0)
                elif dj == 2:
                    z_t = jnp.where(right_ok, z_t, 0.0)
                h = z_t if h is None else h + z_t
            hidden_parts.append(h)
        hidden = (hidden_parts[0] if ipb == 1
                  else jnp.concatenate(hidden_parts, axis=0))   # (ipb*R, Ch)

        # (3) Bias + ReLU + 1x1 conv + residual add (all rows are interior).
        mid = jnp.maximum(hidden + b1_ref[l], 0.0)              # (ipb*R, Ch)
        y = jnp.dot(mid, w2_ref[l],
                    preferred_element_type=jnp.float32) + b2_ref[l]
        act_ref[...] = act_ref[...] + y

    # Trailing ReLU of the stack; emit interior rows only.
    for m in range(ipb):
        o_ref[m] = jnp.maximum(act_ref[pl.ds(m * R, R), :], 0.0)


# -------------------------------- host glue ---------------------------------

def residual_stack_forward(x_nchw, params, *, num_residual_layers):
    N, C, H, W = x_nchw.shape
    L = num_residual_layers
    Ch = params['res0_w1'].shape[0]            # num_residual_hiddens
    R = H * W                                  # interior rows per image
    guard = _round_up(W + 1, 8)                # >= max vertical tap reach (W+1)
    seg = R + guard                            # per-image stride inside zbuf

    # Images per grid step: keep >= 2 grid steps (v7x runs 2 TensorCores on a
    # "parallel" grid) while batching sublane rows toward the MXU sweet spot
    # for larger N.  For the toy N=2 this stays at 1 image / step.
    ipb = 1
    if N > 2:
        for cand in range(N // 2, 0, -1):
            if N % cand == 0 and cand * R <= 512:
                ipb = cand
                break
    grid = (N // ipb,)

    # Single layout pass each way (only needed because the module interface is
    # NCHW); the (N,H,W,C)->(N,H*W,C) reshape is free.
    x_rc = jnp.transpose(x_nchw, (0, 2, 3, 1)).reshape(N, R, C)

    # Lane-dense stacked weights:
    #   w1s[l] : (C, 9*Ch), tap-major column blocks with t = 3*di + dj
    #   w2s[l] : (Ch, C)
    w1s = jnp.stack([
        jnp.transpose(params[f'res{l}_w1'], (1, 2, 3, 0)).reshape(C, 9 * Ch)
        for l in range(L)])
    b1s = jnp.stack([params[f'res{l}_b1'].reshape(1, Ch) for l in range(L)])
    w2s = jnp.stack([params[f'res{l}_w2'][:, :, 0, 0].T for l in range(L)])
    b2s = jnp.stack([params[f'res{l}_b2'].reshape(1, C) for l in range(L)])

    kernel = functools.partial(
        _residual_stack_kernel, num_layers=L, R=R, W=W, C=C, Ch=Ch,
        ipb=ipb, guard=guard, seg=seg)

    # VMEM budget (worst case here, lane-padded): act 32 KB + zbuf 48 KB +
    # double-buffered 8 KB in/out blocks + ~150 KB padded weights -- far under
    # the 32 MiB default scoped limit on v5e/v6e/v7x, so no vmem_limit_bytes.
    out = pl.pallas_call(
        kernel,
        out_shape=jax.ShapeDtypeStruct((N, R, C), jnp.float32),
        grid=grid,
        in_specs=[
            pl.BlockSpec((ipb, R, C), lambda g: (g, 0, 0)),        # activations
            pl.BlockSpec((L, C, 9 * Ch), lambda g: (0, 0, 0)),     # conv3x3 W
            pl.BlockSpec((L, 1, Ch), lambda g: (0, 0, 0)),         # conv3x3 b
            pl.BlockSpec((L, Ch, C), lambda g: (0, 0, 0)),         # conv1x1 W
            pl.BlockSpec((L, 1, C), lambda g: (0, 0, 0)),          # conv1x1 b
        ],
        out_specs=pl.BlockSpec((ipb, R, C), lambda g: (g, 0, 0)),
        scratch_shapes=[
            pltpu.VMEM((ipb * R, C), jnp.float32),                 # activation
            pltpu.VMEM((guard + ipb * seg, 9 * Ch), jnp.float32),  # Z + guards
        ],
        compiler_params=pltpu.CompilerParams(
            dimension_semantics=("parallel",)),
    )(x_rc, w1s, b1s, w2s, b2s)

    return jnp.transpose(out.reshape(N, H, W, C), (0, 3, 1, 2))   # back to NCHW


# --------------------------- params & pure-JAX ref ---------------------------

def _conv_init(key, cout, cin, k):
    kw_, kb_ = jax.random.split(key)
    bound = 1.0 / math.sqrt(cin * k * k)
    w = jax.random.uniform(kw_, (cout, cin, k, k), jnp.float32, -bound, bound)
    b = jax.random.uniform(kb_, (cout,), jnp.float32, -bound, bound)
    return w, b


def init_residual_stack_params(key, in_channels, num_hiddens,
                               num_residual_layers, num_residual_hiddens):
    assert in_channels == num_hiddens, "residual add requires matching channels"
    params = {}
    keys = jax.random.split(key, 2 * num_residual_layers)
    for l in range(num_residual_layers):
        params[f'res{l}_w1'], params[f'res{l}_b1'] = _conv_init(
            keys[2 * l], num_residual_hiddens, in_channels, 3)
        params[f'res{l}_w2'], params[f'res{l}_b2'] = _conv_init(
            keys[2 * l + 1], num_hiddens, num_residual_hiddens, 1)
    return params


def _conv_ref(x, w, b, pad):
    y = jax.lax.conv_general_dilated(
        x, w, window_strides=(1, 1), padding=[(pad, pad), (pad, pad)],
        dimension_numbers=('NCHW', 'OIHW', 'NCHW'))
    return y + b.reshape(1, -1, 1, 1)


def residual_stack_ref(x, params, num_residual_layers):
    h = x
    for l in range(num_residual_layers):
        blk = _conv_ref(jax.nn.relu(h), params[f'res{l}_w1'], params[f'res{l}_b1'], 1)
        blk = _conv_ref(jax.nn.relu(blk), params[f'res{l}_w2'], params[f'res{l}_b2'], 0)
        h = h + blk
    return jax.nn.relu(h)


# ----------------------------------- main ------------------------------------

if __name__ == "__main__":
    num_hiddens, num_residual_hiddens, num_residual_layers = 32, 8, 2
    N, H, W = 2, 8, 8

    key = jax.random.PRNGKey(0)
    kx, kp = jax.random.split(key)
    x = jax.random.normal(kx, (N, num_hiddens, H, W), jnp.float32)
    params = init_residual_stack_params(kp, num_hiddens, num_hiddens,
                                        num_residual_layers, num_residual_hiddens)

    fwd = jax.jit(functools.partial(residual_stack_forward,
                                    num_residual_layers=num_residual_layers))
    out = jax.block_until_ready(fwd(x, params))

    ref = residual_stack_ref(x, params, num_residual_layers)
    assert out.shape == (N, num_hiddens, H, W), out.shape
    assert jnp.allclose(out, ref, atol=2e-3, rtol=2e-3), \
        float(jnp.max(jnp.abs(out - ref)))
    print("KERNEL_OK")
</pallas_src>

<mosaic_0001>
module attributes {stable_mosaic.version = 11 : i64} {
  func.func @_residual_stack_kernel(%arg0: i32, %arg1: memref<1x64x32xf32, #tpu.memory_space<vmem>>, %arg2: memref<2x32x72xf32, #tpu.memory_space<vmem>>, %arg3: memref<2x1x8xf32, #tpu.memory_space<vmem>>, %arg4: memref<2x8x32xf32, #tpu.memory_space<vmem>>, %arg5: memref<2x1x32xf32, #tpu.memory_space<vmem>>, %arg6: memref<1x64x32xf32, #tpu.memory_space<vmem>>, %arg7: memref<64x32xf32, #tpu.memory_space<vmem>>, %arg8: memref<96x72xf32, #tpu.memory_space<vmem>>) attributes {dimension_semantics = [#tpu.dimension_semantics<parallel>], iteration_bounds = array<i64: 2>, scalar_prefetch = 0 : i64, scratch_operands = 2 : i64, tpu.core_type = #tpu.core_type<tc>, window_params = [{transform_indices = @transform_0, window_bounds = array<i64: 1, 64, 32>}, {pipeline_mode = #tpu.pipeline_mode<synchronous>, transform_indices = @transform_1, window_bounds = array<i64: 2, 32, 72>}, {pipeline_mode = #tpu.pipeline_mode<synchronous>, transform_indices = @transform_2, window_bounds = array<i64: 2, 1, 8>}, {pipeline_mode = #tpu.pipeline_mode<synchronous>, transform_indices = @transform_3, window_bounds = array<i64: 2, 8, 32>}, {pipeline_mode = #tpu.pipeline_mode<synchronous>, transform_indices = @transform_4, window_bounds = array<i64: 2, 1, 32>}, {transform_indices = @transform_5, window_bounds = array<i64: 1, 64, 32>}]} {
    %c0 = arith.constant 0 : index
    %c0_0 = arith.constant 0 : index
    %c0_1 = arith.constant 0 : index
    %0 = vector.load %arg1[%c0, %c0_0, %c0_1] : memref<1x64x32xf32, #tpu.memory_space<vmem>>, vector<1x64x32xf32>
    %1 = vector.shape_cast %0 : vector<1x64x32xf32> to vector<64x32xf32>
    %c0_2 = arith.constant 0 : index
    %c0_3 = arith.constant 0 : index
    %2 = vector.load %arg7[%c0_2, %c0_3] : memref<64x32xf32, #tpu.memory_space<vmem>>, vector<64x32xf32>
    tpu.vector_store %arg7[%c0_2, %c0_3], %1 {strides = array<i32>} : memref<64x32xf32, #tpu.memory_space<vmem>>, vector<64x32xf32>,
    %cst = arith.constant 0.000000e+00 : f32
    %3 = vector.broadcast %cst : f32 to vector<96x72xf32>
    %c0_4 = arith.constant 0 : index
    %c0_5 = arith.constant 0 : index
    %4 = vector.load %arg8[%c0_4, %c0_5] : memref<96x72xf32, #tpu.memory_space<vmem>>, vector<96x72xf32>
    tpu.vector_store %arg8[%c0_4, %c0_5], %3 {strides = array<i32>} : memref<96x72xf32, #tpu.memory_space<vmem>>, vector<96x72xf32>,
    %5 = tpu.iota {dimensions = array<i32: 0>} : vector<64x8xi32>
    %c8_i32 = arith.constant 8 : i32
    %c0_i32 = arith.constant 0 : i32
    %6 = arith.cmpi eq, %c8_i32, %c0_i32 : i32
    %c1_i32 = arith.constant 1 : i32
    %7 = arith.select %6, %c1_i32, %c8_i32 : i32
    %8 = vector.broadcast %7 : i32 to vector<64x8xi32>
    %9 = arith.remsi %5, %8 : vector<64x8xi32>
    %c0_i32_6 = arith.constant 0 : i32
    %10 = vector.broadcast %c0_i32_6 : i32 to vector<64x8xi32>
    %11 = arith.cmpi ne, %9, %10 : vector<64x8xi32>
    %c0_i32_7 = arith.constant 0 : i32
    %12 = vector.broadcast %c0_i32_7 : i32 to vector<64x8xi32>
    %13 = arith.cmpi slt, %9, %12 : vector<64x8xi32>
    %c0_i32_8 = arith.constant 0 : i32
    %14 = arith.cmpi slt, %7, %c0_i32_8 : i32
    %15 = vector.broadcast %14 : i1 to vector<64x8xi1>
    %16 = vector.broadcast %15 : vector<64x8xi1> to vector<64x8xi1>
    %17 = arith.xori %13, %16 : vector<64x8xi1>
    %18 = arith.andi %17, %11 : vector<64x8xi1>
    %19 = vector.broadcast %7 : i32 to vector<64x8xi32>
    %20 = arith.addi %9, %19 : vector<64x8xi32>
    %21 = arith.select %18, %20, %9 : vector<64x8xi1>, vector<64x8xi32>
    %c1_i32_9 = arith.constant 1 : i32
    %22 = vector.broadcast %c1_i32_9 : i32 to vector<64x8xi32>
    %23 = arith.cmpi sge, %21, %22 : vector<64x8xi32>
    %c6_i32 = arith.constant 6 : i32
    %24 = vector.broadcast %c6_i32 : i32 to vector<64x8xi32>
    %25 = arith.cmpi sle, %21, %24 : vector<64x8xi32>
    %c0_10 = arith.constant 0 : index
    %c0_11 = arith.constant 0 : index
    %26 = vector.load %arg7[%c0_10, %c0_11] : memref<64x32xf32, #tpu.memory_space<vmem>>, vector<64x32xf32>
    %cst_12 = arith.constant 0.000000e+00 : f32
    %27 = vector.broadcast %cst_12 : f32 to vector<64x32xf32>
    %28 = arith.maximumf %26, %27 : vector<64x32xf32>
    %c0_13 = arith.constant 0 : index
    %c0_14 = arith.constant 0 : index
    %c0_15 = arith.constant 0 : index
    %29 = vector.load %arg2[%c0_13, %c0_14, %c0_15] : memref<2x32x72xf32, #tpu.memory_space<vmem>>, vector<1x32x72xf32>
    %30 = vector.shape_cast %29 : vector<1x32x72xf32> to vector<32x72xf32>
    %cst_16 = arith.constant dense<0.000000e+00> : vector<64x72xf32>
    %31 = tpu.matmul %28, %30, %cst_16 {dimension_numbers = #tpu.dot_dimension_numbers<[1], [0], [0], [1], [0, 0, 1, 1], [], []>} : vector<64x32xf32>, vector<32x72xf32>, vector<64x72xf32> -> vector<64x72xf32>
    %c16 = arith.constant 16 : index
    %c0_17 = arith.constant 0 : index
    %32 = vector.load %arg8[%c16, %c0_17] : memref<96x72xf32, #tpu.memory_space<vmem>>, vector<64x72xf32>
    tpu.vector_store %arg8[%c16, %c0_17], %31 {strides = array<i32>} : memref<96x72xf32, #tpu.memory_space<vmem>>, vector<64x72xf32>,
    %c7 = arith.constant 7 : index
    %c0_18 = arith.constant 0 : index
    %33 = vector.load %arg8[%c7, %c0_18] : memref<96x72xf32, #tpu.memory_space<vmem>>, vector<64x72xf32>
    %34 = vector.extract_strided_slice %33 {offsets = [0, 0], sizes = [64, 8], strides = [1, 1]} : vector<64x72xf32> to vector<64x8xf32>
    %cst_19 = arith.constant 0.000000e+00 : f32
    %35 = vector.broadcast %cst_19 : f32 to vector<64x8xf32>
    %36 = arith.select %23, %34, %35 : vector<64x8xi1>, vector<64x8xf32>
    %c8 = arith.constant 8 : index
    %c0_20 = arith.constant 0 : index
    %37 = vector.load %arg8[%c8, %c0_20] : memref<96x72xf32, #tpu.memory_space<vmem>>, vector<64x72xf32>
    %38 = vector.extract_strided_slice %37 {offsets = [0, 8], sizes = [64, 8], strides = [1, 1]} : vector<64x72xf32> to vector<64x8xf32>
    %39 = arith.addf %36, %38 : vector<64x8xf32>
    %c9 = arith.constant 9 : index
    %c0_21 = arith.constant 0 : index
    %40 = vector.load %arg8[%c9, %c0_21] : memref<96x72xf32, #tpu.memory_space<vmem>>, vector<64x72xf32>
    %41 = vector.extract_strided_slice %40 {offsets = [0, 16], sizes = [64, 8], strides = [1, 1]} : vector<64x72xf32> to vector<64x8xf32>
    %cst_22 = arith.constant 0.000000e+00 : f32
    %42 = vector.broadcast %cst_22 : f32 to vector<64x8xf32>
    %43 = arith.select %25, %41, %42 : vector<64x8xi1>, vector<64x8xf32>
    %44 = arith.addf %39, %43 : vector<64x8xf32>
    %c15 = arith.constant 15 : index
    %c0_23 = arith.constant 0 : index
    %45 = vector.load %arg8[%c15, %c0_23] : memref<96x72xf32, #tpu.memory_space<vmem>>, vector<64x72xf32>
    %46 = vector.extract_strided_slice %45 {offsets = [0, 24], sizes = [64, 8], strides = [1, 1]} : vector<64x72xf32> to vector<64x8xf32>
    %cst_24 = arith.constant 0.000000e+00 : f32
    %47 = vector.broadcast %cst_24 : f32 to vector<64x8xf32>
    %48 = arith.select %23, %46, %47 : vector<64x8xi1>, vector<64x8xf32>
    %49 = arith.addf %44, %48 : vector<64x8xf32>
    %c16_25 = arith.constant 16 : index
    %c0_26 = arith.constant 0 : index
    %50 = vector.load %arg8[%c16_25, %c0_26] : memref<96x72xf32, #tpu.memory_space<vmem>>, vector<64x72xf32>
    %51 = vector.extract_strided_slice %50 {offsets = [0, 32], sizes = [64, 8], strides = [1, 1]} : vector<64x72xf32> to vector<64x8xf32>
    %52 = arith.addf %49, %51 : vector<64x8xf32>
    %c17 = arith.constant 17 : index
    %c0_27 = arith.constant 0 : index
    %53 = vector.load %arg8[%c17, %c0_27] : memref<96x72xf32, #tpu.memory_space<vmem>>, vector<64x72xf32>
    %54 = vector.extract_strided_slice %53 {offsets = [0, 40], sizes = [64, 8], strides = [1, 1]} : vector<64x72xf32> to vector<64x8xf32>
    %cst_28 = arith.constant 0.000000e+00 : f32
    %55 = vector.broadcast %cst_28 : f32 to vector<64x8xf32>
    %56 = arith.select %25, %54, %55 : vector<64x8xi1>, vector<64x8xf32>
    %57 = arith.addf %52, %56 : vector<64x8xf32>
    %c23 = arith.constant 23 : index
    %c0_29 = arith.constant 0 : index
    %58 = vector.load %arg8[%c23, %c0_29] : memref<96x72xf32, #tpu.memory_space<vmem>>, vector<64x72xf32>
    %59 = vector.extract_strided_slice %58 {offsets = [0, 48], sizes = [64, 8], strides = [1, 1]} : vector<64x72xf32> to vector<64x8xf32>
    %cst_30 = arith.constant 0.000000e+00 : f32
    %60 = vector.broadcast %cst_30 : f32 to vector<64x8xf32>
    %61 = arith.select %23, %59, %60 : vector<64x8xi1>, vector<64x8xf32>
    %62 = arith.addf %57, %61 : vector<64x8xf32>
    %c24 = arith.constant 24 : index
    %c0_31 = arith.constant 0 : index
    %63 = vector.load %arg8[%c24, %c0_31] : memref<96x72xf32, #tpu.memory_space<vmem>>, vector<64x72xf32>
    %64 = vector.extract_strided_slice %63 {offsets = [0, 56], sizes = [64, 8], strides = [1, 1]} : vector<64x72xf32> to vector<64x8xf32>
    %65 = arith.addf %62, %64 : vector<64x8xf32>
    %c25 = arith.constant 25 : index
    %c0_32 = arith.constant 0 : index
    %66 = vector.load %arg8[%c25, %c0_32] : memref<96x72xf32, #tpu.memory_space<vmem>>, vector<64x72xf32>
    %67 = vector.extract_strided_slice %66 {offsets = [0, 64], sizes = [64, 8], strides = [1, 1]} : vector<64x72xf32> to vector<64x8xf32>
    %cst_33 = arith.constant 0.000000e+00 : f32
    %68 = vector.broadcast %cst_33 : f32 to vector<64x8xf32>
    %69 = arith.select %25, %67, %68 : vector<64x8xi1>, vector<64x8xf32>
    %70 = arith.addf %65, %69 : vector<64x8xf32>
    %c0_34 = arith.constant 0 : index
    %c0_35 = arith.constant 0 : index
    %c0_36 = arith.constant 0 : index
    %71 = vector.load %arg3[%c0_34, %c0_35, %c0_36] : memref<2x1x8xf32, #tpu.memory_space<vmem>>, vector<1x1x8xf32>
    %72 = vector.shape_cast %71 : vector<1x1x8xf32> to vector<1x8xf32>
    %73 = vector.broadcast %72 : vector<1x8xf32> to vector<64x8xf32>
    %74 = arith.addf %70, %73 : vector<64x8xf32>
    %cst_37 = arith.constant 0.000000e+00 : f32
    %75 = vector.broadcast %cst_37 : f32 to vector<64x8xf32>
    %76 = arith.maximumf %74, %75 : vector<64x8xf32>
    %c0_38 = arith.constant 0 : index
    %c0_39 = arith.constant 0 : index
    %c0_40 = arith.constant 0 : index
    %77 = vector.load %arg4[%c0_38, %c0_39, %c0_40] : memref<2x8x32xf32, #tpu.memory_space<vmem>>, vector<1x8x32xf32>
    %78 = vector.shape_cast %77 : vector<1x8x32xf32> to vector<8x32xf32>
    %cst_41 = arith.constant dense<0.000000e+00> : vector<64x32xf32>
    %79 = tpu.matmul %76, %78, %cst_41 {dimension_numbers = #tpu.dot_dimension_numbers<[1], [0], [0], [1], [0, 0, 1, 1], [], []>} : vector<64x8xf32>, vector<8x32xf32>, vector<64x32xf32> -> vector<64x32xf32>
    %c0_42 = arith.constant 0 : index
    %c0_43 = arith.constant 0 : index
    %c0_44 = arith.constant 0 : index
    %80 = vector.load %arg5[%c0_42, %c0_43, %c0_44] : memref<2x1x32xf32, #tpu.memory_space<vmem>>, vector<1x1x32xf32>
    %81 = vector.shape_cast %80 : vector<1x1x32xf32> to vector<1x32xf32>
    %82 = vector.broadcast %81 : vector<1x32xf32> to vector<64x32xf32>
    %83 = arith.addf %79, %82 : vector<64x32xf32>
    %c0_45 = arith.constant 0 : index
    %c0_46 = arith.constant 0 : index
    %84 = vector.load %arg7[%c0_45, %c0_46] : memref<64x32xf32, #tpu.memory_space<vmem>>, vector<64x32xf32>
    %85 = arith.addf %84, %83 : vector<64x32xf32>
    %c0_47 = arith.constant 0 : index
    %c0_48 = arith.constant 0 : index
    %86 = vector.load %arg7[%c0_47, %c0_48] : memref<64x32xf32, #tpu.memory_space<vmem>>, vector<64x32xf32>
    tpu.vector_store %arg7[%c0_47, %c0_48], %85 {strides = array<i32>} : memref<64x32xf32, #tpu.memory_space<vmem>>, vector<64x32xf32>,
    %c0_49 = arith.constant 0 : index
    %c0_50 = arith.constant 0 : index
    %87 = vector.load %arg7[%c0_49, %c0_50] : memref<64x32xf32, #tpu.memory_space<vmem>>, vector<64x32xf32>
    %cst_51 = arith.constant 0.000000e+00 : f32
    %88 = vector.broadcast %cst_51 : f32 to vector<64x32xf32>
    %89 = arith.maximumf %87, %88 : vector<64x32xf32>
    %c1 = arith.constant 1 : index
    %c0_52 = arith.constant 0 : index
    %c0_53 = arith.constant 0 : index
    %90 = vector.load %arg2[%c1, %c0_52, %c0_53] : memref<2x32x72xf32, #tpu.memory_space<vmem>>, vector<1x32x72xf32>
    %91 = vector.shape_cast %90 : vector<1x32x72xf32> to vector<32x72xf32>
    %cst_54 = arith.constant dense<0.000000e+00> : vector<64x72xf32>
    %92 = tpu.matmul %89, %91, %cst_54 {dimension_numbers = #tpu.dot_dimension_numbers<[1], [0], [0], [1], [0, 0, 1, 1], [], []>} : vector<64x32xf32>, vector<32x72xf32>, vector<64x72xf32> -> vector<64x72xf32>
    %c16_55 = arith.constant 16 : index
    %c0_56 = arith.constant 0 : index
    %93 = vector.load %arg8[%c16_55, %c0_56] : memref<96x72xf32, #tpu.memory_space<vmem>>, vector<64x72xf32>
    tpu.vector_store %arg8[%c16_55, %c0_56], %92 {strides = array<i32>} : memref<96x72xf32, #tpu.memory_space<vmem>>, vector<64x72xf32>,
    %c7_57 = arith.constant 7 : index
    %c0_58 = arith.constant 0 : index
    %94 = vector.load %arg8[%c7_57, %c0_58] : memref<96x72xf32, #tpu.memory_space<vmem>>, vector<64x72xf32>
    %95 = vector.extract_strided_slice %94 {offsets = [0, 0], sizes = [64, 8], strides = [1, 1]} : vector<64x72xf32> to vector<64x8xf32>
    %cst_59 = arith.constant 0.000000e+00 : f32
    %96 = vector.broadcast %cst_59 : f32 to vector<64x8xf32>
    %97 = arith.select %23, %95, %96 : vector<64x8xi1>, vector<64x8xf32>
    %c8_60 = arith.constant 8 : index
    %c0_61 = arith.constant 0 : index
    %98 = vector.load %arg8[%c8_60, %c0_61] : memref<96x72xf32, #tpu.memory_space<vmem>>, vector<64x72xf32>
    %99 = vector.extract_strided_slice %98 {offsets = [0, 8], sizes = [64, 8], strides = [1, 1]} : vector<64x72xf32> to vector<64x8xf32>
    %100 = arith.addf %97, %99 : vector<64x8xf32>
    %c9_62 = arith.constant 9 : index
    %c0_63 = arith.constant 0 : index
    %101 = vector.load %arg8[%c9_62, %c0_63] : memref<96x72xf32, #tpu.memory_space<vmem>>, vector<64x72xf32>
    %102 = vector.extract_strided_slice %101 {offsets = [0, 16], sizes = [64, 8], strides = [1, 1]} : vector<64x72xf32> to vector<64x8xf32>
    %cst_64 = arith.constant 0.000000e+00 : f32
    %103 = vector.broadcast %cst_64 : f32 to vector<64x8xf32>
    %104 = arith.select %25, %102, %103 : vector<64x8xi1>, vector<64x8xf32>
    %105 = arith.addf %100, %104 : vector<64x8xf32>
    %c15_65 = arith.constant 15 : index
    %c0_66 = arith.constant 0 : index
    %106 = vector.load %arg8[%c15_65, %c0_66] : memref<96x72xf32, #tpu.memory_space<vmem>>, vector<64x72xf32>
    %107 = vector.extract_strided_slice %106 {offsets = [0, 24], sizes = [64, 8], strides = [1, 1]} : vector<64x72xf32> to vector<64x8xf32>
    %cst_67 = arith.constant 0.000000e+00 : f32
    %108 = vector.broadcast %cst_67 : f32 to vector<64x8xf32>
    %109 = arith.select %23, %107, %108 : vector<64x8xi1>, vector<64x8xf32>
    %110 = arith.addf %105, %109 : vector<64x8xf32>
    %c16_68 = arith.constant 16 : index
    %c0_69 = arith.constant 0 : index
    %111 = vector.load %arg8[%c16_68, %c0_69] : memref<96x72xf32, #tpu.memory_space<vmem>>, vector<64x72xf32>
    %112 = vector.extract_strided_slice %111 {offsets = [0, 32], sizes = [64, 8], strides = [1, 1]} : vector<64x72xf32> to vector<64x8xf32>
    %113 = arith.addf %110, %112 : vector<64x8xf32>
    %c17_70 = arith.constant 17 : index
    %c0_71 = arith.constant 0 : index
    %114 = vector.load %arg8[%c17_70, %c0_71] : memref<96x72xf32, #tpu.memory_space<vmem>>, vector<64x72xf32>
    %115 = vector.extract_strided_slice %114 {offsets = [0, 40], sizes = [64, 8], strides = [1, 1]} : vector<64x72xf32> to vector<64x8xf32>
    %cst_72 = arith.constant 0.000000e+00 : f32
    %116 = vector.broadcast %cst_72 : f32 to vector<64x8xf32>
    %117 = arith.select %25, %115, %116 : vector<64x8xi1>, vector<64x8xf32>
    %118 = arith.addf %113, %117 : vector<64x8xf32>
    %c23_73 = arith.constant 23 : index
    %c0_74 = arith.constant 0 : index
    %119 = vector.load %arg8[%c23_73, %c0_74] : memref<96x72xf32, #tpu.memory_space<vmem>>, vector<64x72xf32>
    %120 = vector.extract_strided_slice %119 {offsets = [0, 48], sizes = [64, 8], strides = [1, 1]} : vector<64x72xf32> to vector<64x8xf32>
    %cst_75 = arith.constant 0.000000e+00 : f32
    %121 = vector.broadcast %cst_75 : f32 to vector<64x8xf32>
    %122 = arith.select %23, %120, %121 : vector<64x8xi1>, vector<64x8xf32>
    %123 = arith.addf %118, %122 : vector<64x8xf32>
    %c24_76 = arith.constant 24 : index
    %c0_77 = arith.constant 0 : index
    %124 = vector.load %arg8[%c24_76, %c0_77] : memref<96x72xf32, #tpu.memory_space<vmem>>, vector<64x72xf32>
    %125 = vector.extract_strided_slice %124 {offsets = [0, 56], sizes = [64, 8], strides = [1, 1]} : vector<64x72xf32> to vector<64x8xf32>
    %126 = arith.addf %123, %125 : vector<64x8xf32>
    %c25_78 = arith.constant 25 : index
    %c0_79 = arith.constant 0 : index
    %127 = vector.load %arg8[%c25_78, %c0_79] : memref<96x72xf32, #tpu.memory_space<vmem>>, vector<64x72xf32>
    %128 = vector.extract_strided_slice %127 {offsets = [0, 64], sizes = [64, 8], strides = [1, 1]} : vector<64x72xf32> to vector<64x8xf32>
    %cst_80 = arith.constant 0.000000e+00 : f32
    %129 = vector.broadcast %cst_80 : f32 to vector<64x8xf32>
    %130 = arith.select %25, %128, %129 : vector<64x8xi1>, vector<64x8xf32>
    %131 = arith.addf %126, %130 : vector<64x8xf32>
    %c1_81 = arith.constant 1 : index
    %c0_82 = arith.constant 0 : index
    %c0_83 = arith.constant 0 : index
    %132 = vector.load %arg3[%c1_81, %c0_82, %c0_83] : memref<2x1x8xf32, #tpu.memory_space<vmem>>, vector<1x1x8xf32>
    %133 = vector.shape_cast %132 : vector<1x1x8xf32> to vector<1x8xf32>
    %134 = vector.broadcast %133 : vector<1x8xf32> to vector<64x8xf32>
    %135 = arith.addf %131, %134 : vector<64x8xf32>
    %cst_84 = arith.constant 0.000000e+00 : f32
    %136 = vector.broadcast %cst_84 : f32 to vector<64x8xf32>
    %137 = arith.maximumf %135, %136 : vector<64x8xf32>
    %c1_85 = arith.constant 1 : index
    %c0_86 = arith.constant 0 : index
    %c0_87 = arith.constant 0 : index
    %138 = vector.load %arg4[%c1_85, %c0_86, %c0_87] : memref<2x8x32xf32, #tpu.memory_space<vmem>>, vector<1x8x32xf32>
    %139 = vector.shape_cast %138 : vector<1x8x32xf32> to vector<8x32xf32>
    %cst_88 = arith.constant dense<0.000000e+00> : vector<64x32xf32>
    %140 = tpu.matmul %137, %139, %cst_88 {dimension_numbers = #tpu.dot_dimension_numbers<[1], [0], [0], [1], [0, 0, 1, 1], [], []>} : vector<64x8xf32>, vector<8x32xf32>, vector<64x32xf32> -> vector<64x32xf32>
    %c1_89 = arith.constant 1 : index
    %c0_90 = arith.constant 0 : index
    %c0_91 = arith.constant 0 : index
    %141 = vector.load %arg5[%c1_89, %c0_90, %c0_91] : memref<2x1x32xf32, #tpu.memory_space<vmem>>, vector<1x1x32xf32>
    %142 = vector.shape_cast %141 : vector<1x1x32xf32> to vector<1x32xf32>
    %143 = vector.broadcast %142 : vector<1x32xf32> to vector<64x32xf32>
    %144 = arith.addf %140, %143 : vector<64x32xf32>
    %c0_92 = arith.constant 0 : index
    %c0_93 = arith.constant 0 : index
    %145 = vector.load %arg7[%c0_92, %c0_93] : memref<64x32xf32, #tpu.memory_space<vmem>>, vector<64x32xf32>
    %146 = arith.addf %145, %144 : vector<64x32xf32>
    %c0_94 = arith.constant 0 : index
    %c0_95 = arith.constant 0 : index
    %147 = vector.load %arg7[%c0_94, %c0_95] : memref<64x32xf32, #tpu.memory_space<vmem>>, vector<64x32xf32>
    tpu.vector_store %arg7[%c0_94, %c0_95], %146 {strides = array<i32>} : memref<64x32xf32, #tpu.memory_space<vmem>>, vector<64x32xf32>,
    %c0_96 = arith.constant 0 : index
    %c0_97 = arith.constant 0 : index
    %148 = vector.load %arg7[%c0_96, %c0_97] : memref<64x32xf32, #tpu.memory_space<vmem>>, vector<64x32xf32>
    %cst_98 = arith.constant 0.000000e+00 : f32
    %149 = vector.broadcast %cst_98 : f32 to vector<64x32xf32>
    %150 = arith.maximumf %148, %149 : vector<64x32xf32>
    %c0_99 = arith.constant 0 : index
    %c0_100 = arith.constant 0 : index
    %c0_101 = arith.constant 0 : index
    %151 = vector.load %arg6[%c0_99, %c0_100, %c0_101] : memref<1x64x32xf32, #tpu.memory_space<vmem>>, vector<1x64x32xf32>
    %152 = vector.shape_cast %151 : vector<1x64x32xf32> to vector<64x32xf32>
    %153 = vector.shape_cast %150 : vector<64x32xf32> to vector<1x64x32xf32>
    tpu.vector_store %arg6[%c0_99, %c0_100, %c0_101], %153 {strides = array<i32>} : memref<1x64x32xf32, #tpu.memory_space<vmem>>, vector<1x64x32xf32>,
    return
  }
  func.func @transform_0(%arg0: i32) -> (i32, i32, i32) {
    %c0_i32 = arith.constant 0 : i32
    %c0_i32_0 = arith.constant 0 : i32
    %c0_i32_1 = arith.constant 0 : i32
    return %arg0, %c0_i32, %c0_i32_0 : i32, i32, i32
  }
  func.func @transform_1(%arg0: i32) -> (i32, i32, i32) {
    %c0_i32 = arith.constant 0 : i32
    %c0_i32_0 = arith.constant 0 : i32
    %c0_i32_1 = arith.constant 0 : i32
    %c0_i32_2 = arith.constant 0 : i32
    return %c0_i32, %c0_i32_0, %c0_i32_1 : i32, i32, i32
  }
  func.func @transform_2(%arg0: i32) -> (i32, i32, i32) {
    %c0_i32 = arith.constant 0 : i32
    %c0_i32_0 = arith.constant 0 : i32
    %c0_i32_1 = arith.constant 0 : i32
    %c0_i32_2 = arith.constant 0 : i32
    return %c0_i32, %c0_i32_0, %c0_i32_1 : i32, i32, i32
  }
  func.func @transform_3(%arg0: i32) -> (i32, i32, i32) {
    %c0_i32 = arith.constant 0 : i32
    %c0_i32_0 = arith.constant 0 : i32
    %c0_i32_1 = arith.constant 0 : i32
    %c0_i32_2 = arith.constant 0 : i32
    return %c0_i32, %c0_i32_0, %c0_i32_1 : i32, i32, i32
  }
  func.func @transform_4(%arg0: i32) -> (i32, i32, i32) {
    %c0_i32 = arith.constant 0 : i32
    %c0_i32_0 = arith.constant 0 : i32
    %c0_i32_1 = arith.constant 0 : i32
    %c0_i32_2 = arith.constant 0 : i32
    return %c0_i32, %c0_i32_0, %c0_i32_1 : i32, i32, i32
  }
  func.func @transform_5(%arg0: i32) -> (i32, i32, i32) {
    %c0_i32 = arith.constant 0 : i32
    %c0_i32_0 = arith.constant 0 : i32
    %c0_i32_1 = arith.constant 0 : i32
    return %arg0, %c0_i32, %c0_i32_0 : i32, i32, i32
  }
}

</mosaic_0001>

<llo_original>
// kernel: residual_stack_forward.1
$region0: #{residual_stack_forward.1}
  #allocation0 [shape = 'u32[]', space=smem, size = 0x4, offset = 0x4, fixed_abs, tag = 'smem constant byte address 0x4 - core index']
  #allocation1 [shape = 'u32[144,128]{1,0:T(1,128)}', space=vmem, size = 0x12000, scoped, tag = 'internal scratch']
  #allocation2 [shape = 'f32[64,32]{1,0:T(8,128)}', space=vmem, size = 0x8000, scoped, tag = 'scratch operand']
  #allocation3 [shape = 'f32[96,72]{1,0:T(8,128)}', space=vmem, size = 0xc000, scoped, tag = 'scratch operand']
  %s0 = inlined_call_operand.vmem [shape: f32[2,64,32], index: 0, kind: input, shape index: {}]
  %s1 = inlined_call_operand.vmem [shape: f32[2,32,72], index: 1, kind: input, shape index: {}]
  %s2 = inlined_call_operand.vmem [shape: f32[2,1,8], index: 2, kind: input, shape index: {}]
  %s3 = inlined_call_operand.vmem [shape: f32[2,8,32], index: 3, kind: input, shape index: {}]
  %s4 = inlined_call_operand.vmem [shape: f32[2,1,32], index: 4, kind: input, shape index: {}]
  %s5 = inlined_call_operand.hbm [shape: f32[2,64,32], index: 5, kind: output, shape index: {}]
  %s6 = sld [smem:[#allocation0]]
  $region53: #{residual_stack_forward.1} parent=0
    _
  %s8 = ssub.s32 1, %s6
  %s9 = scalar_select 0, %s8, %s6
  $region1: #{residual_stack_forward.1} parent=0
    #allocation4 [shape = 'u8[65536]{0}', space=vmem, size = 0x10000, scoped, tag = 'output window, operand 0']
    #allocation5 [shape = 's32[2]{0}', space=sflag, size = 0x8, scoped, tag = 'scoped memory for residual_stack_forward.1']
    %10 = vsyncpa [#allocation5], 0
    %s11 = scalar_lea.sflag [#allocation5], 1
    %12 = vsyncpa %s11, 0
    loop: start=0, step=1, limit=4
    $region2: #{residual_stack_forward.1} parent=1 // loop_pre_header
      _
    $region3: #{residual_stack_forward.1} parent=1 // loop_header
      %s14 = sphi 0, %s18
      %p15 = scmp.ge.s32.totalorder %s14, 4
      %s24 = sphi 0, %s26
      %s27 = sphi 0, %s24
      %s28 = sphi 0, %s27
      %s44 = sphi 0, %s28
      %s48 = sphi 0, %s48
      %s50 = sphi 0, %s48
      %s51 = sphi 0, %s50
      %s65 = sphi 0, %s51
      %s69 = sphi 0, %s69
      %s71 = sphi 0, %s69
      %s72 = sphi 0, %s71
      %s86 = sphi 0, %s72
      %s90 = sphi 0, %s90
      %s92 = sphi 0, %s90
      %s93 = sphi 0, %s92
      %s107 = sphi 0, %s93
      %s111 = sphi 0, %s111
      %s113 = sphi 0, %s111
      %s114 = sphi 0, %s113
      %s128 = sphi 0, %s114
      %s134 = sphi 0, %s136
      %s137 = sphi 0, %s134
      %s138 = sphi 0, %s137
      %s154 = sphi 0, %s138
    $region4: #{residual_stack_forward.1} parent=1 // loop_header_branch
      %17 = sbr.rel (%p15) target = $region8
    $region5: #{residual_stack_forward.1} parent=1 // loop_body
      %s19 = ssub.s32 %s14, 1
      %s20 = ssub.s32 %s14, 2
      %s21 = sadd.s32 %s14, 1
      %s22 = ssub.s32 %s14, %s21
      %p23 = scmp.eq.s32.totalorder %s22, 0
      %s25 = sadd.s32 %s24, 1
      %s26 = scalar_select %p23, %s24, %s25
      %p29 = pneg %p23
      %p30 = scmp.eq.s32.totalorder %s14, 1
      %p31 = por %p29, %p30
      %p32 = scmp.ne.s32.totalorder %s24, %s27
      %p33 = scmp.eq.s32.totalorder %s14, 0
      %p34 = por %p32, %p33
      %p35 = scmp.ne.s32.totalorder %s24, %s27
      %p36 = scmp.eq.s32.totalorder %s19, 1
      %p37 = por %p35, %p36
      %p38 = scmp.ne.s32.totalorder %s27, %s28
      %p39 = scmp.eq.s32.totalorder %s19, 0
      %p40 = por %p38, %p39
      %p41 = scmp.ne.s32.totalorder %s27, %s28
      %p42 = scmp.eq.s32.totalorder %s20, 1
      %p43 = por %p41, %p42
      %p45 = scmp.ne.s32.totalorder %s28, %s44
      %p46 = scmp.eq.s32.totalorder %s20, 0
      %p47 = por %p45, %p46
      %s49 = sadd.s32 %s48, 1
      %p52 = scmp.eq.s32.totalorder %s14, 1
      %p53 = scmp.ne.s32.totalorder %s48, %s50
      %p54 = scmp.eq.s32.totalorder %s14, 0
      %p55 = por %p53, %p54
      %p56 = scmp.ne.s32.totalorder %s48, %s50
      %p57 = scmp.eq.s32.totalorder %s19, 1
      %p58 = por %p56, %p57
      %p59 = scmp.ne.s32.totalorder %s50, %s51
      %p60 = scmp.eq.s32.totalorder %s19, 0
      %p61 = por %p59, %p60
      %p62 = scmp.ne.s32.totalorder %s50, %s51
      %p63 = scmp.eq.s32.totalorder %s20, 1
      %p64 = por %p62, %p63
      %p66 = scmp.ne.s32.totalorder %s51, %s65
      %p67 = scmp.eq.s32.totalorder %s20, 0
      %p68 = por %p66, %p67
      %s70 = sadd.s32 %s69, 1
      %p73 = scmp.eq.s32.totalorder %s14, 1
      %p74 = scmp.ne.s32.totalorder %s69, %s71
      %p75 = scmp.eq.s32.totalorder %s14, 0
      %p76 = por %p74, %p75
      %p77 = scmp.ne.s32.totalorder %s69, %s71
      %p78 = scmp.eq.s32.totalorder %s19, 1
      %p79 = por %p77, %p78
      %p80 = scmp.ne.s32.totalorder %s71, %s72
      %p81 = scmp.eq.s32.totalorder %s19, 0
      %p82 = por %p80, %p81
      %p83 = scmp.ne.s32.totalorder %s71, %s72
      %p84 = scmp.eq.s32.totalorder %s20, 1
      %p85 = por %p83, %p84
      %p87 = scmp.ne.s32.totalorder %s72, %s86
      %p88 = scmp.eq.s32.totalorder %s20, 0
      %p89 = por %p87, %p88
      %s91 = sadd.s32 %s90, 1
      %p94 = scmp.eq.s32.totalorder %s14, 1
      %p95 = scmp.ne.s32.totalorder %s90, %s92
      %p96 = scmp.eq.s32.totalorder %s14, 0
      %p97 = por %p95, %p96
      %p98 = scmp.ne.s32.totalorder %s90, %s92
      %p99 = scmp.eq.s32.totalorder %s19, 1
      %p100 = por %p98, %p99
      %p101 = scmp.ne.s32.totalorder %s92, %s93
      %p102 = scmp.eq.s32.totalorder %s19, 0
      %p103 = por %p101, %p102
      %p104 = scmp.ne.s32.totalorder %s92, %s93
      %p105 = scmp.eq.s32.totalorder %s20, 1
      %p106 = por %p104, %p105
      %p108 = scmp.ne.s32.totalorder %s93, %s107
      %p109 = scmp.eq.s32.totalorder %s20, 0
      %p110 = por %p108, %p109
      %s112 = sadd.s32 %s111, 1
      %p115 = scmp.eq.s32.totalorder %s14, 1
      %p116 = scmp.ne.s32.totalorder %s111, %s113
      %p117 = scmp.eq.s32.totalorder %s14, 0
      %p118 = por %p116, %p117
      %p119 = scmp.ne.s32.totalorder %s111, %s113
      %p120 = scmp.eq.s32.totalorder %s19, 1
      %p121 = por %p119, %p120
      %p122 = scmp.ne.s32.totalorder %s113, %s114
      %p123 = scmp.eq.s32.totalorder %s19, 0
      %p124 = por %p122, %p123
      %p125 = scmp.ne.s32.totalorder %s113, %s114
      %p126 = scmp.eq.s32.totalorder %s20, 1
      %p127 = por %p125, %p126
      %p129 = scmp.ne.s32.totalorder %s114, %s128
      %p130 = scmp.eq.s32.totalorder %s20, 0
      %p131 = por %p129, %p130
      %s132 = ssub.s32 %s14, %s21
      %p133 = scmp.eq.s32.totalorder %s132, 0
      %s135 = sadd.s32 %s134, 1
      %s136 = scalar_select %p133, %s134, %s135
      %p139 = pneg %p133
      %p140 = scmp.eq.s32.totalorder %s14, 1
      %p141 = por %p139, %p140
      %p142 = scmp.ne.s32.totalorder %s134, %s137
      %p143 = scmp.eq.s32.totalorder %s14, 0
      %p144 = por %p142, %p143
      %p145 = scmp.ne.s32.totalorder %s134, %s137
      %p146 = scmp.eq.s32.totalorder %s19, 1
      %p147 = por %p145, %p146
      %p148 = scmp.ne.s32.totalorder %s137, %s138
      %p149 = scmp.eq.s32.totalorder %s19, 0
      %p150 = por %p148, %p149
      %p151 = scmp.ne.s32.totalorder %s137, %s138
      %p152 = scmp.eq.s32.totalorder %s20, 1
      %p153 = por %p151, %p152
      %p155 = scmp.ne.s32.totalorder %s138, %s154
      %p156 = scmp.eq.s32.totalorder %s20, 0
      %p157 = por %p155, %p156
      %p158 = scmp.le.s32.totalorder 1, %s14
      %p159 = scmp.lt.s32.totalorder %s14, 3
      %p160 = pnand %p158, %p159
      %p161 = pneg %p160
      // Predicated region
      $region9: #{residual_stack_forward.1} parent=5 // pred_check
        _
      $region10: #{residual_stack_forward.1} parent=5 // pred_check_branch
        %163 = sbr.rel (%p160) target = $region12
      $region11: #{residual_stack_forward.1} parent=5 // pred_region
        %s164 = ssub.s32 %s14, 1
        // Predicated region
        $region13: #{residual_stack_forward.1} parent=11 // pred_check
          %p165 = pneg %p61
        $region14: #{residual_stack_forward.1} parent=11 // pred_check_branch
          %167 = sbr.rel (%p165) target = $region16
        $region15: #{residual_stack_forward.1} parent=11 // pred_region
          _
        $region16: #{residual_stack_forward.1} parent=11 // pred_fallthru
          _
        // Predicated region
        $region17: #{residual_stack_forward.1} parent=11 // pred_check
          %p168 = pneg %p82
        $region18: #{residual_stack_forward.1} parent=11 // pred_check_branch
          %170 = sbr.rel (%p168) target = $region20
        $region19: #{residual_stack_forward.1} parent=11 // pred_region
          _
        $region20: #{residual_stack_forward.1} parent=11 // pred_fallthru
          _
        // Predicated region
        $region21: #{residual_stack_forward.1} parent=11 // pred_check
          %p171 = pneg %p103
        $region22: #{residual_stack_forward.1} parent=11 // pred_check_branch
          %173 = sbr.rel (%p171) target = $region24
        $region23: #{residual_stack_forward.1} parent=11 // pred_region
          _
        $region24: #{residual_stack_forward.1} parent=11 // pred_fallthru
          _
        // Predicated region
        $region25: #{residual_stack_forward.1} parent=11 // pred_check
          %p174 = pneg %p124
        $region26: #{residual_stack_forward.1} parent=11 // pred_check_branch
          %176 = sbr.rel (%p174) target = $region28
        $region27: #{residual_stack_forward.1} parent=11 // pred_region
          _
        $region28: #{residual_stack_forward.1} parent=11 // pred_fallthru
          _
      $region12: #{residual_stack_forward.1} parent=5 // pred_fallthru
        _
      %p177 = scmp.lt.s32.totalorder %s14, 2
      // Predicated region
      $region29: #{residual_stack_forward.1} parent=5 // pred_check
        %p178 = pneg %p177
      $region30: #{residual_stack_forward.1} parent=5 // pred_check_branch
        %180 = sbr.rel (%p178) target = $region32
      $region31: #{residual_stack_forward.1} parent=5 // pred_region
        // Predicated region
        $region33: #{residual_stack_forward.1} parent=31 // pred_check
          %p181 = pneg %p34
        $region34: #{residual_stack_forward.1} parent=31 // pred_check_branch
          %183 = sbr.rel (%p181) target = $region36
        $region35: #{residual_stack_forward.1} parent=31 // pred_region
          %p184 = scmp.lt.s32.totalorder %s14, 1
          %s185 = scalar_select %p184, %s14, 1
          %s186 = smul.addr %s185, 8
          %s187 = smul.addr %s186, 8
          %s188 = scalar_lea.vmem %s0, %s187
        $region36: #{residual_stack_forward.1} parent=31 // pred_fallthru
          _
      $region32: #{residual_stack_forward.1} parent=5 // pred_fallthru
        _
      %p189 = scmp.le.s32.totalorder 1, %s14
      %p190 = scmp.lt.s32.totalorder %s14, 3
      %p191 = pnand %p189, %p190
      %p192 = pneg %p191
      // Predicated region
      $region37: #{residual_stack_forward.1} parent=5 // pred_check
        _
      $region38: #{residual_stack_forward.1} parent=5 // pred_check_branch
        %194 = sbr.rel (%p191) target = $region40
      $region39: #{residual_stack_forward.1} parent=5 // pred_region
        %s195 = ssub.s32 %s14, 1
        %p196 = scmp.lt.s32.totalorder %s19, 1
        %s197 = scalar_select %p196, %s19, 1
        %s198 = smul.addr %s197, 8
        %s199 = smul.addr %s198, 8
        %s200 = scalar_lea.vmem %s0, %s199
        %p201 = pneg %p40
        %p202 = pneg %p37
        %p203 = pneg %p61
        %p204 = pneg %p58
        %p205 = pneg %p82
        %p206 = pneg %p79
        %p207 = pneg %p103
        %p208 = pneg %p100
        %p209 = pneg %p124
        %p210 = pneg %p121
        %p211 = pneg %p150
        %p212 = pneg %p147
        %s213 = sand.u32 %s137, 1
        %s214 = scalar_lea.sflag [#allocation5], %s213
        %s215 = sand.u32 %s137, 1
        %s216 = smul.addr %s215, 64
        %s217 = scalar_lea.vmem [#allocation4], %s216
        %p218 = scmp.lt.s32.totalorder %s19, 1
        %s219 = scalar_select %p218, %s19, 1
        %s220 = smul.addr %s219, 8
        %s221 = smul.addr %s220, 8
        %s222 = scalar_lea.vmem %s0, %s221
        %v223 = vld [vmem:[%s222] sm:$0xff]
        %v224 = vld [vmem:[%s222 + $0x8] sm:$0xff]
        %v225 = vld [vmem:[%s222 + $0x10] sm:$0xff]
        %v226 = vld [vmem:[%s222 + $0x18] sm:$0xff]
        %v227 = vld [vmem:[%s222 + $0x20] sm:$0xff]
        %v228 = vld [vmem:[%s222 + $0x28] sm:$0xff]
        %v229 = vld [vmem:[%s222 + $0x30] sm:$0xff]
        %v230 = vld [vmem:[%s222 + $0x38] sm:$0xff]
        %vm231 = vcmask 261120
        %232 = vst.msk [vmem:[#allocation2] sm:$0xff] %vm231, %v223
        %233 = vst.msk [vmem:[#allocation2 + $0x8] sm:$0xff] %vm231, %v224
        %234 = vst.msk [vmem:[#allocation2 + $0x10] sm:$0xff] %vm231, %v225
        %235 = vst.msk [vmem:[#allocation2 + $0x18] sm:$0xff] %vm231, %v226
        %236 = vst.msk [vmem:[#allocation2 + $0x20] sm:$0xff] %vm231, %v227
        %237 = vst.msk [vmem:[#allocation2 + $0x28] sm:$0xff] %vm231, %v228
        %238 = vst.msk [vmem:[#allocation2 + $0x30] sm:$0xff] %vm231, %v229
        %239 = vst.msk [vmem:[#allocation2 + $0x38] sm:$0xff] %vm231, %v230
        %vm240 = vcmask 588800
        %241 = vst.msk [vmem:[#allocation3] sm:$0xff] %vm240, 0.0
        %242 = vst.msk [vmem:[#allocation3 + $0x8] sm:$0xff] %vm240, 0.0
        %243 = vst.msk [vmem:[#allocation3 + $0x10] sm:$0xff] %vm240, 0.0
        %244 = vst.msk [vmem:[#allocation3 + $0x18] sm:$0xff] %vm240, 0.0
        %245 = vst.msk [vmem:[#allocation3 + $0x20] sm:$0xff] %vm240, 0.0
        %246 = vst.msk [vmem:[#allocation3 + $0x28] sm:$0xff] %vm240, 0.0
        %247 = vst.msk [vmem:[#allocation3 + $0x30] sm:$0xff] %vm240, 0.0
        %248 = vst.msk [vmem:[#allocation3 + $0x38] sm:$0xff] %vm240, 0.0
        %249 = vst.msk [vmem:[#allocation3 + $0x40] sm:$0xff] %vm240, 0.0
        %250 = vst.msk [vmem:[#allocation3 + $0x48] sm:$0xff] %vm240, 0.0
        %251 = vst.msk [vmem:[#allocation3 + $0x50] sm:$0xff] %vm240, 0.0
        %252 = vst.msk [vmem:[#allocation3 + $0x58] sm:$0xff] %vm240, 0.0
        %v253 = vlaneseq
        %v254 = vshrl.u32 %v253, 7
        %v255 = vadd.s32 %v254, 8
        %v256 = vadd.s32 %v254, 16
        %v257 = vadd.s32 %v254, 24
        %v258 = vadd.s32 %v254, 32
        %v259 = vadd.s32 %v254, 40
        %v260 = vadd.s32 %v254, 48
        %v261 = vadd.s32 %v254, 56
        %vm262 = vcmp.lt.s32.totalorder %v254, 0
        %v263 = vsub.s32 0, %v254
        %v264 = vsel %vm262, %v263, %v254
        %v265 = vshrl.u32 %v264, 3
        %v266 = vand.u32 %v264, 7
        %v267 = vsub.s32 0, %v266
        %v268 = vsel %vm262, %v267, %v266
        %vm269 = vcmp.lt.s32.totalorder %v255, 0
        %v270 = vsub.s32 0, %v255
        %v271 = vsel %vm269, %v270, %v255
        %v272 = vshrl.u32 %v271, 3
        %v273 = vand.u32 %v271, 7
        %v274 = vsub.s32 0, %v273
        %v275 = vsel %vm269, %v274, %v273
        %vm276 = vcmp.lt.s32.totalorder %v256, 0
        %v277 = vsub.s32 0, %v256
        %v278 = vsel %vm276, %v277, %v256
        %v279 = vshrl.u32 %v278, 3
        %v280 = vand.u32 %v278, 7
        %v281 = vsub.s32 0, %v280
        %v282 = vsel %vm276, %v281, %v280
        %vm283 = vcmp.lt.s32.totalorder %v257, 0
        %v284 = vsub.s32 0, %v257
        %v285 = vsel %vm283, %v284, %v257
        %v286 = vshrl.u32 %v285, 3
        %v287 = vand.u32 %v285, 7
        %v288 = vsub.s32 0, %v287
        %v289 = vsel %vm283, %v288, %v287
        %vm290 = vcmp.lt.s32.totalorder %v258, 0
        %v291 = vsub.s32 0, %v258
        %v292 = vsel %vm290, %v291, %v258
        %v293 = vshrl.u32 %v292, 3
        %v294 = vand.u32 %v292, 7
        %v295 = vsub.s32 0, %v294
        %v296 = vsel %vm290, %v295, %v294
        %vm297 = vcmp.lt.s32.totalorder %v259, 0
        %v298 = vsub.s32 0, %v259
        %v299 = vsel %vm297, %v298, %v259
        %v300 = vshrl.u32 %v299, 3
        %v301 = vand.u32 %v299, 7
        %v302 = vsub.s32 0, %v301
        %v303 = vsel %vm297, %v302, %v301
        %vm304 = vcmp.lt.s32.totalorder %v260, 0
        %v305 = vsub.s32 0, %v260
        %v306 = vsel %vm304, %v305, %v260
        %v307 = vshrl.u32 %v306, 3
        %v308 = vand.u32 %v306, 7
        %v309 = vsub.s32 0, %v308
        %v310 = vsel %vm304, %v309, %v308
        %vm311 = vcmp.lt.s32.totalorder %v261, 0
        %v312 = vsub.s32 0, %v261
        %v313 = vsel %vm311, %v312, %v261
        %v314 = vshrl.u32 %v313, 3
        %v315 = vand.u32 %v313, 7
        %v316 = vsub.s32 0, %v315
        %v317 = vsel %vm311, %v316, %v315
        %vm318 = vcmp.ne.s32.totalorder %v268, 0
        %vm319 = vcmp.ne.s32.totalorder %v275, 0
        %vm320 = vcmp.ne.s32.totalorder %v282, 0
        %vm321 = vcmp.ne.s32.totalorder %v289, 0
        %vm322 = vcmp.ne.s32.totalorder %v296, 0
        %vm323 = vcmp.ne.s32.totalorder %v303, 0
        %vm324 = vcmp.ne.s32.totalorder %v310, 0
        %vm325 = vcmp.ne.s32.totalorder %v317, 0
        %vm326 = vcmp.lt.s32.totalorder %v268, 0
        %vm327 = vcmp.lt.s32.totalorder %v275, 0
        %vm328 = vcmp.lt.s32.totalorder %v282, 0
        %vm329 = vcmp.lt.s32.totalorder %v289, 0
        %vm330 = vcmp.lt.s32.totalorder %v296, 0
        %vm331 = vcmp.lt.s32.totalorder %v303, 0
        %vm332 = vcmp.lt.s32.totalorder %v310, 0
        %vm333 = vcmp.lt.s32.totalorder %v317, 0
        %vm334 = vmand %vm326, %vm318
        %vm335 = vmand %vm327, %vm319
        %vm336 = vmand %vm328, %vm320
        %vm337 = vmand %vm329, %vm321
        %vm338 = vmand %vm330, %vm322
        %vm339 = vmand %vm331, %vm323
        %vm340 = vmand %vm332, %vm324
        %vm341 = vmand %vm333, %vm325
        %v342 = vadd.s32 %v268, 8
        %v343 = vadd.s32 %v275, 8
        %v344 = vadd.s32 %v282, 8
        %v345 = vadd.s32 %v289, 8
        %v346 = vadd.s32 %v296, 8
        %v347 = vadd.s32 %v303, 8
        %v348 = vadd.s32 %v310, 8
        %v349 = vadd.s32 %v317, 8
        %v350 = vsel %vm334, %v342, %v268
        %v351 = vsel %vm335, %v343, %v275
        %v352 = vsel %vm336, %v344, %v282
        %v353 = vsel %vm337, %v345, %v289
        %v354 = vsel %vm338, %v346, %v296
        %v355 = vsel %vm339, %v347, %v303
        %v356 = vsel %vm340, %v348, %v310
        %v357 = vsel %vm341, %v349, %v317
        %vm358 = vcmp.ge.s32.totalorder %v350, 1
        %vm359 = vcmp.ge.s32.totalorder %v351, 1
        %vm360 = vcmp.ge.s32.totalorder %v352, 1
        %vm361 = vcmp.ge.s32.totalorder %v353, 1
        %vm362 = vcmp.ge.s32.totalorder %v354, 1
        %vm363 = vcmp.ge.s32.totalorder %v355, 1
        %vm364 = vcmp.ge.s32.totalorder %v356, 1
        %vm365 = vcmp.ge.s32.totalorder %v357, 1
        %vm366 = vcmp.le.s32.totalorder %v350, 6
        %vm367 = vcmp.le.s32.totalorder %v351, 6
        %vm368 = vcmp.le.s32.totalorder %v352, 6
        %vm369 = vcmp.le.s32.totalorder %v353, 6
        %vm370 = vcmp.le.s32.totalorder %v354, 6
        %vm371 = vcmp.le.s32.totalorder %v355, 6
        %vm372 = vcmp.le.s32.totalorder %v356, 6
        %vm373 = vcmp.le.s32.totalorder %v357, 6
        %v374 = vld [vmem:[#allocation2] sm:$0xff]
        %v375 = vld [vmem:[#allocation2 + $0x8] sm:$0xff]
        %v376 = vld [vmem:[#allocation2 + $0x10] sm:$0xff]
        %v377 = vld [vmem:[#allocation2 + $0x18] sm:$0xff]
        %v378 = vld [vmem:[#allocation2 + $0x20] sm:$0xff]
        %v379 = vld [vmem:[#allocation2 + $0x28] sm:$0xff]
        %v380 = vld [vmem:[#allocation2 + $0x30] sm:$0xff]
        %v381 = vld [vmem:[#allocation2 + $0x38] sm:$0xff]
        %v382 = vmax.f32 %v374, 0.0
        %v383 = vmax.f32 %v375, 0.0
        %v384 = vmax.f32 %v376, 0.0
        %v385 = vmax.f32 %v377, 0.0
        %v386 = vmax.f32 %v378, 0.0
        %v387 = vmax.f32 %v379, 0.0
        %v388 = vmax.f32 %v380, 0.0
        %v389 = vmax.f32 %v381, 0.0
        %v390 = vld [vmem:[%s1] sm:$0xff]
        %v391 = vld [vmem:[%s1 + $0x8] sm:$0xff]
        %v392 = vld [vmem:[%s1 + $0x10] sm:$0xff]
        %v393 = vld [vmem:[%s1 + $0x18] sm:$0xff]
        %v395 = vsel %vm231, %v382, 0
        %v398 = vsel %vm231, %v383, 0
        %v401 = vsel %vm231, %v384, 0
        %v404 = vsel %vm231, %v385, 0
        %v407 = vsel %vm231, %v386, 0
        %v410 = vsel %vm231, %v387, 0
        %v413 = vsel %vm231, %v388, 0
        %v416 = vsel %vm231, %v389, 0
        %418 = vmatprep.subr.mxu0 0.0
        %419 = vmatpush1.msra.mxu0 %v390
        %420 = vmatprep.subr.mxu0 0.0
        %421 = vmatpush1.msra.mxu0 %v391
        %422 = vmatprep.subr.mxu0 0.0
        %423 = vmatpush1.msra.mxu0 %v392
        %424 = vmatprep.subr.mxu0 0.0
        %425 = vmatpush1.msra.mxu0 %v393
        %426 = vmatprep.subr.mxu0 0.0
        %427 = vmatpush1.msra.mxu0 0.0
        %428 = vmatprep.subr.mxu0 0.0
        %429 = vmatpush1.msra.mxu0 0.0
        %430 = vmatprep.subr.mxu0 0.0
        %431 = vmatpush1.msra.mxu0 0.0
        %432 = vmatprep.subr.mxu0 0.0
        %433 = vmatpush1.msra.mxu0 0.0
        %434 = vmatprep.subr.mxu0 0.0
        %435 = vmatpush1.msra.mxu0 0.0
        %436 = vmatprep.subr.mxu0 0.0
        %437 = vmatpush1.msra.mxu0 0.0
        %438 = vmatprep.subr.mxu0 0.0
        %439 = vmatpush1.msra.mxu0 0.0
        %440 = vmatprep.subr.mxu0 0.0
        %441 = vmatpush1.msra.mxu0 0.0
        %442 = vmatprep.subr.mxu0 0.0
        %443 = vmatpush1.msra.mxu0 0.0
        %444 = vmatprep.subr.mxu0 0.0
        %445 = vmatpush1.msra.mxu0 0.0
        %446 = vmatprep.subr.mxu0 0.0
        %447 = vmatpush1.msra.mxu0 0.0
        %448 = vmatprep.subr.mxu0 0.0
        %449 = vmatpush1.msra.mxu0 0.0
        %450 = vmatprep.subr.mxu0 0.0
        %451 = vmatpush1.msra.mxu0 0.0
        %452 = vmatprep.subr.mxu0 0.0
        %453 = vmatpush1.msra.mxu0 0.0
        %454 = vmatprep.subr.mxu0 0.0
        %455 = vmatpush1.msra.mxu0 0.0
        %456 = vmatprep.subr.mxu0 0.0
        %457 = vmatpush1.msra.mxu0 0.0
        %458 = vmatprep.subr.mxu0 0.0
        %459 = vmatpush1.msra.mxu0 0.0
        %460 = vmatprep.subr.mxu0 0.0
        %461 = vmatpush1.msra.mxu0 0.0
        %462 = vmatprep.subr.mxu0 0.0
        %463 = vmatpush1.msra.mxu0 0.0
        %464 = vmatprep.subr.mxu0 0.0
        %465 = vmatpush1.msra.mxu0 0.0
        %466 = vmatprep.subr.mxu0 0.0
        %467 = vmatpush1.msra.mxu0 0.0
        %468 = vmatprep.subr.mxu0 0.0
        %469 = vmatpush1.msra.mxu0 0.0
        %470 = vmatprep.subr.mxu0 0.0
        %471 = vmatpush1.msra.mxu0 0.0
        %472 = vmatprep.subr.mxu0 0.0
        %473 = vmatpush1.msra.mxu0 0.0
        %474 = vmatprep.subr.mxu0 0.0
        %475 = vmatpush1.msra.mxu0 0.0
        %476 = vmatprep.subr.mxu0 0.0
        %477 = vmatpush1.msra.mxu0 0.0
        %478 = vmatprep.subr.mxu0 0.0
        %479 = vmatpush1.msra.mxu0 0.0
        %480 = vmatprep.subr.mxu0 0.0
        %481 = vmatpush1.msra.mxu0 0.0
        %482 = vmatprep.mubr.f32.mxu0 0.0
        %483 = vmatmul.mubr.f32.gmra.mrb[0].mxu0 %v395
        %v484 = vpop.f32.mrb[0].mxu0
        %v485 = vadd.f32 0.0, %v484
        %v486 = vpop.f32.mrb[0].mxu0
        %487 = vmatprep.mubr.f32.mxu0 0.0
        %488 = vmatmul.mubr.f32.gmra.mrb[0].mxu0 %v398
        %v489 = vpop.f32.mrb[0].mxu0
        %v490 = vadd.f32 0.0, %v489
        %v491 = vpop.f32.mrb[0].mxu0
        %492 = vmatprep.mubr.f32.mxu0 0.0
        %493 = vmatmul.mubr.f32.gmra.mrb[0].mxu0 %v401
        %v494 = vpop.f32.mrb[0].mxu0
        %v495 = vadd.f32 0.0, %v494
        %v496 = vpop.f32.mrb[0].mxu0
        %497 = vmatprep.mubr.f32.mxu0 0.0
        %498 = vmatmul.mubr.f32.gmra.mrb[0].mxu0 %v404
        %v499 = vpop.f32.mrb[0].mxu0
        %v500 = vadd.f32 0.0, %v499
        %v501 = vpop.f32.mrb[0].mxu0
        %502 = vmatprep.mubr.f32.mxu0 0.0
        %503 = vmatmul.mubr.f32.gmra.mrb[0].mxu0 %v407
        %v504 = vpop.f32.mrb[0].mxu0
        %v505 = vadd.f32 0.0, %v504
        %v506 = vpop.f32.mrb[0].mxu0
        %507 = vmatprep.mubr.f32.mxu0 0.0
        %508 = vmatmul.mubr.f32.gmra.mrb[0].mxu0 %v410
        %v509 = vpop.f32.mrb[0].mxu0
        %v510 = vadd.f32 0.0, %v509
        %v511 = vpop.f32.mrb[0].mxu0
        %512 = vmatprep.mubr.f32.mxu0 0.0
        %513 = vmatmul.mubr.f32.gmra.mrb[0].mxu0 %v413
        %v514 = vpop.f32.mrb[0].mxu0
        %v515 = vadd.f32 0.0, %v514
        %v516 = vpop.f32.mrb[0].mxu0
        %517 = vmatprep.mubr.f32.mxu0 0.0
        %518 = vmatmul.mubr.f32.gmra.mrb[0].mxu0 %v416
        %v519 = vpop.f32.mrb[0].mxu0
        %v520 = vadd.f32 0.0, %v519
        %v521 = vpop.f32.mrb[0].mxu0
        %522 = vdwg.mxu0
        %523 = vst.msk [vmem:[#allocation3 + $0x10] sm:$0xff] %vm240, %v485
        %524 = vst.msk [vmem:[#allocation3 + $0x18] sm:$0xff] %vm240, %v490
        %525 = vst.msk [vmem:[#allocation3 + $0x20] sm:$0xff] %vm240, %v495
        %526 = vst.msk [vmem:[#allocation3 + $0x28] sm:$0xff] %vm240, %v500
        %527 = vst.msk [vmem:[#allocation3 + $0x30] sm:$0xff] %vm240, %v505
        %528 = vst.msk [vmem:[#allocation3 + $0x38] sm:$0xff] %vm240, %v510
        %529 = vst.msk [vmem:[#allocation3 + $0x40] sm:$0xff] %vm240, %v515
        %530 = vst.msk [vmem:[#allocation3 + $0x48] sm:$0xff] %vm240, %v520
        %v531 = vld [vmem:[#allocation3 + $0x7] sm:$0xff]
        %v532 = vld [vmem:[#allocation3 + $0xf] sm:$0xff]
        %v533 = vld [vmem:[#allocation3 + $0x17] sm:$0xff]
        %v534 = vld [vmem:[#allocation3 + $0x1f] sm:$0xff]
        %v535 = vld [vmem:[#allocation3 + $0x27] sm:$0xff]
        %v536 = vld [vmem:[#allocation3 + $0x2f] sm:$0xff]
        %v537 = vld [vmem:[#allocation3 + $0x37] sm:$0xff]
        %v538 = vld [vmem:[#allocation3 + $0x3f] sm:$0xff]
        %v539 = vsel %vm358, %v531, 0.0
        %v540 = vsel %vm359, %v532, 0.0
        %v541 = vsel %vm360, %v533, 0.0
        %v542 = vsel %vm361, %v534, 0.0
        %v543 = vsel %vm362, %v535, 0.0
        %v544 = vsel %vm363, %v536, 0.0
        %v545 = vsel %vm364, %v537, 0.0
        %v546 = vsel %vm365, %v538, 0.0
        %v547 = vld [vmem:[#allocation3 + $0x8] sm:$0xff]
        %v548 = vld [vmem:[#allocation3 + $0x10] sm:$0xff]
        %v549 = vld [vmem:[#allocation3 + $0x18] sm:$0xff]
        %v550 = vld [vmem:[#allocation3 + $0x20] sm:$0xff]
        %v551 = vld [vmem:[#allocation3 + $0x28] sm:$0xff]
        %v552 = vld [vmem:[#allocation3 + $0x30] sm:$0xff]
        %v553 = vld [vmem:[#allocation3 + $0x38] sm:$0xff]
        %v554 = vld [vmem:[#allocation3 + $0x40] sm:$0xff]
        %563 = vrot.lane.b32.xlu0 %v547, 120
        %v564 = vpop.permute.xlu0 %563
        %565 = vrot.lane.b32.xlu0 %v548, 120
        %v566 = vpop.permute.xlu0 %565
        %567 = vrot.lane.b32.xlu0 %v549, 120
        %v568 = vpop.permute.xlu0 %567
        %569 = vrot.lane.b32.xlu0 %v550, 120
        %v570 = vpop.permute.xlu0 %569
        %571 = vrot.lane.b32.xlu0 %v551, 120
        %v572 = vpop.permute.xlu0 %571
        %573 = vrot.lane.b32.xlu0 %v552, 120
        %v574 = vpop.permute.xlu0 %573
        %575 = vrot.lane.b32.xlu0 %v553, 120
        %v576 = vpop.permute.xlu0 %575
        %577 = vrot.lane.b32.xlu0 %v554, 120
        %v578 = vpop.permute.xlu0 %577
        %v587 = vadd.f32 %v539, %v564
        %v588 = vadd.f32 %v540, %v566
        %v589 = vadd.f32 %v541, %v568
        %v590 = vadd.f32 %v542, %v570
        %v591 = vadd.f32 %v543, %v572
        %v592 = vadd.f32 %v544, %v574
        %v593 = vadd.f32 %v545, %v576
        %v594 = vadd.f32 %v546, %v578
        %v595 = vld [vmem:[#allocation3 + $0x9] sm:$0xff]
        %v596 = vld [vmem:[#allocation3 + $0x11] sm:$0xff]
        %v597 = vld [vmem:[#allocation3 + $0x19] sm:$0xff]
        %v598 = vld [vmem:[#allocation3 + $0x21] sm:$0xff]
        %v599 = vld [vmem:[#allocation3 + $0x29] sm:$0xff]
        %v600 = vld [vmem:[#allocation3 + $0x31] sm:$0xff]
        %v601 = vld [vmem:[#allocation3 + $0x39] sm:$0xff]
        %v602 = vld [vmem:[#allocation3 + $0x41] sm:$0xff]
        %v603 = vsel %vm366, %v595, 0.0
        %v604 = vsel %vm367, %v596, 0.0
        %v605 = vsel %vm368, %v597, 0.0
        %v606 = vsel %vm369, %v598, 0.0
        %v607 = vsel %vm370, %v599, 0.0
        %v608 = vsel %vm371, %v600, 0.0
        %v609 = vsel %vm372, %v601, 0.0
        %v610 = vsel %vm373, %v602, 0.0
        %619 = vrot.lane.b32.xlu0 %v603, 112
        %v620 = vpop.permute.xlu0 %619
        %621 = vrot.lane.b32.xlu0 %v604, 112
        %v622 = vpop.permute.xlu0 %621
        %623 = vrot.lane.b32.xlu0 %v605, 112
        %v624 = vpop.permute.xlu0 %623
        %625 = vrot.lane.b32.xlu0 %v606, 112
        %v626 = vpop.permute.xlu0 %625
        %627 = vrot.lane.b32.xlu0 %v607, 112
        %v628 = vpop.permute.xlu0 %627
        %629 = vrot.lane.b32.xlu0 %v608, 112
        %v630 = vpop.permute.xlu0 %629
        %631 = vrot.lane.b32.xlu0 %v609, 112
        %v632 = vpop.permute.xlu0 %631
        %633 = vrot.lane.b32.xlu0 %v610, 112
        %v634 = vpop.permute.xlu0 %633
        %v643 = vadd.f32 %v587, %v620
        %v644 = vadd.f32 %v588, %v622
        %v645 = vadd.f32 %v589, %v624
        %v646 = vadd.f32 %v590, %v626
        %v647 = vadd.f32 %v591, %v628
        %v648 = vadd.f32 %v592, %v630
        %v649 = vadd.f32 %v593, %v632
        %v650 = vadd.f32 %v594, %v634
        %v651 = vld [vmem:[#allocation3 + $0x47] sm:$0xff]
        %v652 = vsel %vm358, %v532, 0.0
        %v653 = vsel %vm359, %v533, 0.0
        %v654 = vsel %vm360, %v534, 0.0
        %v655 = vsel %vm361, %v535, 0.0
        %v656 = vsel %vm362, %v536, 0.0
        %v657 = vsel %vm363, %v537, 0.0
        %v658 = vsel %vm364, %v538, 0.0
        %v659 = vsel %vm365, %v651, 0.0
        %668 = vrot.lane.b32.xlu0 %v652, 104
        %v669 = vpop.permute.xlu0 %668
        %670 = vrot.lane.b32.xlu0 %v653, 104
        %v671 = vpop.permute.xlu0 %670
        %672 = vrot.lane.b32.xlu0 %v654, 104
        %v673 = vpop.permute.xlu0 %672
        %674 = vrot.lane.b32.xlu0 %v655, 104
        %v675 = vpop.permute.xlu0 %674
        %676 = vrot.lane.b32.xlu0 %v656, 104
        %v677 = vpop.permute.xlu0 %676
        %678 = vrot.lane.b32.xlu0 %v657, 104
        %v679 = vpop.permute.xlu0 %678
        %680 = vrot.lane.b32.xlu0 %v658, 104
        %v681 = vpop.permute.xlu0 %680
        %682 = vrot.lane.b32.xlu0 %v659, 104
        %v683 = vpop.permute.xlu0 %682
        %v692 = vadd.f32 %v643, %v669
        %v693 = vadd.f32 %v644, %v671
        %v694 = vadd.f32 %v645, %v673
        %v695 = vadd.f32 %v646, %v675
        %v696 = vadd.f32 %v647, %v677
        %v697 = vadd.f32 %v648, %v679
        %v698 = vadd.f32 %v649, %v681
        %v699 = vadd.f32 %v650, %v683
        %v700 = vld [vmem:[#allocation3 + $0x48] sm:$0xff]
        %702 = vrot.lane.b32.xlu0 %v548, 96
        %v703 = vpop.permute.xlu0 %702
        %704 = vrot.lane.b32.xlu0 %v549, 96
        %v705 = vpop.permute.xlu0 %704
        %706 = vrot.lane.b32.xlu0 %v550, 96
        %v707 = vpop.permute.xlu0 %706
        %708 = vrot.lane.b32.xlu0 %v551, 96
        %v709 = vpop.permute.xlu0 %708
        %710 = vrot.lane.b32.xlu0 %v552, 96
        %v711 = vpop.permute.xlu0 %710
        %712 = vrot.lane.b32.xlu0 %v553, 96
        %v713 = vpop.permute.xlu0 %712
        %714 = vrot.lane.b32.xlu0 %v554, 96
        %v715 = vpop.permute.xlu0 %714
        %716 = vrot.lane.b32.xlu0 %v700, 96
        %v717 = vpop.permute.xlu0 %716
        %v726 = vadd.f32 %v692, %v703
        %v727 = vadd.f32 %v693, %v705
        %v728 = vadd.f32 %v694, %v707
        %v729 = vadd.f32 %v695, %v709
        %v730 = vadd.f32 %v696, %v711
        %v731 = vadd.f32 %v697, %v713
        %v732 = vadd.f32 %v698, %v715
        %v733 = vadd.f32 %v699, %v717
        %v734 = vld [vmem:[#allocation3 + $0x49] sm:$0xff]
        %v735 = vsel %vm366, %v596, 0.0
        %v736 = vsel %vm367, %v597, 0.0
        %v737 = vsel %vm368, %v598, 0.0
        %v738 = vsel %vm369, %v599, 0.0
        %v739 = vsel %vm370, %v600, 0.0
        %v740 = vsel %vm371, %v601, 0.0
        %v741 = vsel %vm372, %v602, 0.0
        %v742 = vsel %vm373, %v734, 0.0
        %751 = vrot.lane.b32.xlu0 %v735, 88
        %v752 = vpop.permute.xlu0 %751
        %753 = vrot.lane.b32.xlu0 %v736, 88
        %v754 = vpop.permute.xlu0 %753
        %755 = vrot.lane.b32.xlu0 %v737, 88
        %v756 = vpop.permute.xlu0 %755
        %757 = vrot.lane.b32.xlu0 %v738, 88
        %v758 = vpop.permute.xlu0 %757
        %759 = vrot.lane.b32.xlu0 %v739, 88
        %v760 = vpop.permute.xlu0 %759
        %761 = vrot.lane.b32.xlu0 %v740, 88
        %v762 = vpop.permute.xlu0 %761
        %763 = vrot.lane.b32.xlu0 %v741, 88
        %v764 = vpop.permute.xlu0 %763
        %765 = vrot.lane.b32.xlu0 %v742, 88
        %v766 = vpop.permute.xlu0 %765
        %v775 = vadd.f32 %v726, %v752
        %v776 = vadd.f32 %v727, %v754
        %v777 = vadd.f32 %v728, %v756
        %v778 = vadd.f32 %v729, %v758
        %v779 = vadd.f32 %v730, %v760
        %v780 = vadd.f32 %v731, %v762
        %v781 = vadd.f32 %v732, %v764
        %v782 = vadd.f32 %v733, %v766
        %v783 = vld [vmem:[#allocation3 + $0x4f] sm:$0xff]
        %v784 = vsel %vm358, %v533, 0.0
        %v785 = vsel %vm359, %v534, 0.0
        %v786 = vsel %vm360, %v535, 0.0
        %v787 = vsel %vm361, %v536, 0.0
        %v788 = vsel %vm362, %v537, 0.0
        %v789 = vsel %vm363, %v538, 0.0
        %v790 = vsel %vm364, %v651, 0.0
        %v791 = vsel %vm365, %v783, 0.0
        %800 = vrot.lane.b32.xlu0 %v784, 80
        %v801 = vpop.permute.xlu0 %800
        %802 = vrot.lane.b32.xlu0 %v785, 80
        %v803 = vpop.permute.xlu0 %802
        %804 = vrot.lane.b32.xlu0 %v786, 80
        %v805 = vpop.permute.xlu0 %804
        %806 = vrot.lane.b32.xlu0 %v787, 80
        %v807 = vpop.permute.xlu0 %806
        %808 = vrot.lane.b32.xlu0 %v788, 80
        %v809 = vpop.permute.xlu0 %808
        %810 = vrot.lane.b32.xlu0 %v789, 80
        %v811 = vpop.permute.xlu0 %810
        %812 = vrot.lane.b32.xlu0 %v790, 80
        %v813 = vpop.permute.xlu0 %812
        %814 = vrot.lane.b32.xlu0 %v791, 80
        %v815 = vpop.permute.xlu0 %814
        %v824 = vadd.f32 %v775, %v801
        %v825 = vadd.f32 %v776, %v803
        %v826 = vadd.f32 %v777, %v805
        %v827 = vadd.f32 %v778, %v807
        %v828 = vadd.f32 %v779, %v809
        %v829 = vadd.f32 %v780, %v811
        %v830 = vadd.f32 %v781, %v813
        %v831 = vadd.f32 %v782, %v815
        %v832 = vld [vmem:[#allocation3 + $0x50] sm:$0xff]
        %834 = vrot.lane.b32.xlu0 %v549, 72
        %v835 = vpop.permute.xlu0 %834
        %836 = vrot.lane.b32.xlu0 %v550, 72
        %v837 = vpop.permute.xlu0 %836
        %838 = vrot.lane.b32.xlu0 %v551, 72
        %v839 = vpop.permute.xlu0 %838
        %840 = vrot.lane.b32.xlu0 %v552, 72
        %v841 = vpop.permute.xlu0 %840
        %842 = vrot.lane.b32.xlu0 %v553, 72
        %v843 = vpop.permute.xlu0 %842
        %844 = vrot.lane.b32.xlu0 %v554, 72
        %v845 = vpop.permute.xlu0 %844
        %846 = vrot.lane.b32.xlu0 %v700, 72
        %v847 = vpop.permute.xlu0 %846
        %848 = vrot.lane.b32.xlu0 %v832, 72
        %v849 = vpop.permute.xlu0 %848
        %v858 = vadd.f32 %v824, %v835
        %v859 = vadd.f32 %v825, %v837
        %v860 = vadd.f32 %v826, %v839
        %v861 = vadd.f32 %v827, %v841
        %v862 = vadd.f32 %v828, %v843
        %v863 = vadd.f32 %v829, %v845
        %v864 = vadd.f32 %v830, %v847
        %v865 = vadd.f32 %v831, %v849
        %v866 = vld [vmem:[#allocation3 + $0x51] sm:$0xff]
        %v867 = vsel %vm366, %v597, 0.0
        %v868 = vsel %vm367, %v598, 0.0
        %v869 = vsel %vm368, %v599, 0.0
        %v870 = vsel %vm369, %v600, 0.0
        %v871 = vsel %vm370, %v601, 0.0
        %v872 = vsel %vm371, %v602, 0.0
        %v873 = vsel %vm372, %v734, 0.0
        %v874 = vsel %vm373, %v866, 0.0
        %883 = vrot.lane.b32.xlu0 %v867, 64
        %v884 = vpop.permute.xlu0 %883
        %885 = vrot.lane.b32.xlu0 %v868, 64
        %v886 = vpop.permute.xlu0 %885
        %887 = vrot.lane.b32.xlu0 %v869, 64
        %v888 = vpop.permute.xlu0 %887
        %889 = vrot.lane.b32.xlu0 %v870, 64
        %v890 = vpop.permute.xlu0 %889
        %891 = vrot.lane.b32.xlu0 %v871, 64
        %v892 = vpop.permute.xlu0 %891
        %893 = vrot.lane.b32.xlu0 %v872, 64
        %v894 = vpop.permute.xlu0 %893
        %895 = vrot.lane.b32.xlu0 %v873, 64
        %v896 = vpop.permute.xlu0 %895
        %897 = vrot.lane.b32.xlu0 %v874, 64
        %v898 = vpop.permute.xlu0 %897
        %v907 = vadd.f32 %v858, %v884
        %v908 = vadd.f32 %v859, %v886
        %v909 = vadd.f32 %v860, %v888
        %v910 = vadd.f32 %v861, %v890
        %v911 = vadd.f32 %v862, %v892
        %v912 = vadd.f32 %v863, %v894
        %v913 = vadd.f32 %v864, %v896
        %v914 = vadd.f32 %v865, %v898
        %v915 = vld [vmem:[%s2] sm:$0x1]
        %v917 = vlaneseq
        %v918 = vshrl.u32 %v917, 7
        %v919 = vsub.s32 0, %v918
        %v920 = vrot.slane %v915, %v919
        %v922 = vadd.f32 %v907, %v920
        %v923 = vadd.f32 %v908, %v920
        %v924 = vadd.f32 %v909, %v920
        %v925 = vadd.f32 %v910, %v920
        %v926 = vadd.f32 %v911, %v920
        %v927 = vadd.f32 %v912, %v920
        %v928 = vadd.f32 %v913, %v920
        %v929 = vadd.f32 %v914, %v920
        %v930 = vmax.f32 %v922, 0.0
        %v931 = vmax.f32 %v923, 0.0
        %v932 = vmax.f32 %v924, 0.0
        %v933 = vmax.f32 %v925, 0.0
        %v934 = vmax.f32 %v926, 0.0
        %v935 = vmax.f32 %v927, 0.0
        %v936 = vmax.f32 %v928, 0.0
        %v937 = vmax.f32 %v929, 0.0
        %v938 = vld [vmem:[%s3] sm:$0xff]
        %v939 = vld [vmem:[%s4] sm:$0x1]
        %v941 = vlaneseq
        %v942 = vshrl.u32 %v941, 7
        %v943 = vsub.s32 0, %v942
        %v944 = vrot.slane %v939, %v943
        %vm946 = vcmask 64512
        %v948 = vsel %vm946, %v930, 0
        %v951 = vsel %vm946, %v931, 0
        %v954 = vsel %vm946, %v932, 0
        %v957 = vsel %vm946, %v933, 0
        %v960 = vsel %vm946, %v934, 0
        %v963 = vsel %vm946, %v935, 0
        %v966 = vsel %vm946, %v936, 0
        %v969 = vsel %vm946, %v937, 0
        %971 = vmatprep.subr.mxu0 0.0
        %972 = vmatpush1.msra.mxu0 %v938
        %973 = vmatprep.subr.mxu0 0.0
        %974 = vmatpush1.msra.mxu0 0.0
        %975 = vmatprep.subr.mxu0 0.0
        %976 = vmatpush1.msra.mxu0 0.0
        %977 = vmatprep.subr.mxu0 0.0
        %978 = vmatpush1.msra.mxu0 0.0
        %979 = vmatprep.subr.mxu0 0.0
        %980 = vmatpush1.msra.mxu0 0.0
        %981 = vmatprep.subr.mxu0 0.0
        %982 = vmatpush1.msra.mxu0 0.0
        %983 = vmatprep.subr.mxu0 0.0
        %984 = vmatpush1.msra.mxu0 0.0
        %985 = vmatprep.subr.mxu0 0.0
        %986 = vmatpush1.msra.mxu0 0.0
        %987 = vmatprep.subr.mxu0 0.0
        %988 = vmatpush1.msra.mxu0 0.0
        %989 = vmatprep.subr.mxu0 0.0
        %990 = vmatpush1.msra.mxu0 0.0
        %991 = vmatprep.subr.mxu0 0.0
        %992 = vmatpush1.msra.mxu0 0.0
        %993 = vmatprep.subr.mxu0 0.0
        %994 = vmatpush1.msra.mxu0 0.0
        %995 = vmatprep.subr.mxu0 0.0
        %996 = vmatpush1.msra.mxu0 0.0
        %997 = vmatprep.subr.mxu0 0.0
        %998 = vmatpush1.msra.mxu0 0.0
        %999 = vmatprep.subr.mxu0 0.0
        %1000 = vmatpush1.msra.mxu0 0.0
        %1001 = vmatprep.subr.mxu0 0.0
        %1002 = vmatpush1.msra.mxu0 0.0
        %1003 = vmatprep.subr.mxu0 0.0
        %1004 = vmatpush1.msra.mxu0 0.0
        %1005 = vmatprep.subr.mxu0 0.0
        %1006 = vmatpush1.msra.mxu0 0.0
        %1007 = vmatprep.subr.mxu0 0.0
        %1008 = vmatpush1.msra.mxu0 0.0
        %1009 = vmatprep.subr.mxu0 0.0
        %1010 = vmatpush1.msra.mxu0 0.0
        %1011 = vmatprep.subr.mxu0 0.0
        %1012 = vmatpush1.msra.mxu0 0.0
        %1013 = vmatprep.subr.mxu0 0.0
        %1014 = vmatpush1.msra.mxu0 0.0
        %1015 = vmatprep.subr.mxu0 0.0
        %1016 = vmatpush1.msra.mxu0 0.0
        %1017 = vmatprep.subr.mxu0 0.0
        %1018 = vmatpush1.msra.mxu0 0.0
        %1019 = vmatprep.subr.mxu0 0.0
        %1020 = vmatpush1.msra.mxu0 0.0
        %1021 = vmatprep.subr.mxu0 0.0
        %1022 = vmatpush1.msra.mxu0 0.0
        %1023 = vmatprep.subr.mxu0 0.0
        %1024 = vmatpush1.msra.mxu0 0.0
        %1025 = vmatprep.subr.mxu0 0.0
        %1026 = vmatpush1.msra.mxu0 0.0
        %1027 = vmatprep.subr.mxu0 0.0
        %1028 = vmatpush1.msra.mxu0 0.0
        %1029 = vmatprep.subr.mxu0 0.0
        %1030 = vmatpush1.msra.mxu0 0.0
        %1031 = vmatprep.subr.mxu0 0.0
        %1032 = vmatpush1.msra.mxu0 0.0
        %1033 = vmatprep.subr.mxu0 0.0
        %1034 = vmatpush1.msra.mxu0 0.0
        %1035 = vmatprep.mubr.f32.mxu0 0.0
        %1036 = vmatmul.mubr.f32.gmra.mrb[0].mxu0 %v948
        %v1037 = vpop.f32.mrb[0].mxu0
        %v1038 = vadd.f32 %v944, %v1037
        %v1039 = vpop.f32.mrb[0].mxu0
        %1040 = vmatprep.mubr.f32.mxu0 0.0
        %1041 = vmatmul.mubr.f32.gmra.mrb[0].mxu0 %v951
        %v1042 = vpop.f32.mrb[0].mxu0
        %v1043 = vadd.f32 %v944, %v1042
        %v1044 = vpop.f32.mrb[0].mxu0
        %1045 = vmatprep.mubr.f32.mxu0 0.0
        %1046 = vmatmul.mubr.f32.gmra.mrb[0].mxu0 %v954
        %v1047 = vpop.f32.mrb[0].mxu0
        %v1048 = vadd.f32 %v944, %v1047
        %v1049 = vpop.f32.mrb[0].mxu0
        %1050 = vmatprep.mubr.f32.mxu0 0.0
        %1051 = vmatmul.mubr.f32.gmra.mrb[0].mxu0 %v957
        %v1052 = vpop.f32.mrb[0].mxu0
        %v1053 = vadd.f32 %v944, %v1052
        %v1054 = vpop.f32.mrb[0].mxu0
        %1055 = vmatprep.mubr.f32.mxu0 0.0
        %1056 = vmatmul.mubr.f32.gmra.mrb[0].mxu0 %v960
        %v1057 = vpop.f32.mrb[0].mxu0
        %v1058 = vadd.f32 %v944, %v1057
        %v1059 = vpop.f32.mrb[0].mxu0
        %1060 = vmatprep.mubr.f32.mxu0 0.0
        %1061 = vmatmul.mubr.f32.gmra.mrb[0].mxu0 %v963
        %v1062 = vpop.f32.mrb[0].mxu0
        %v1063 = vadd.f32 %v944, %v1062
        %v1064 = vpop.f32.mrb[0].mxu0
        %1065 = vmatprep.mubr.f32.mxu0 0.0
        %1066 = vmatmul.mubr.f32.gmra.mrb[0].mxu0 %v966
        %v1067 = vpop.f32.mrb[0].mxu0
        %v1068 = vadd.f32 %v944, %v1067
        %v1069 = vpop.f32.mrb[0].mxu0
        %1070 = vmatprep.mubr.f32.mxu0 0.0
        %1071 = vmatmul.mubr.f32.gmra.mrb[0].mxu0 %v969
        %v1072 = vpop.f32.mrb[0].mxu0
        %v1073 = vadd.f32 %v944, %v1072
        %v1074 = vpop.f32.mrb[0].mxu0
        %1075 = vdwg.mxu0
        %v1076 = vld [vmem:[#allocation2] sm:$0xff]
        %v1077 = vld [vmem:[#allocation2 + $0x8] sm:$0xff]
        %v1078 = vld [vmem:[#allocation2 + $0x10] sm:$0xff]
        %v1079 = vld [vmem:[#allocation2 + $0x18] sm:$0xff]
        %v1080 = vld [vmem:[#allocation2 + $0x20] sm:$0xff]
        %v1081 = vld [vmem:[#allocation2 + $0x28] sm:$0xff]
        %v1082 = vld [vmem:[#allocation2 + $0x30] sm:$0xff]
        %v1083 = vld [vmem:[#allocation2 + $0x38] sm:$0xff]
        %v1084 = vadd.f32 %v1076, %v1038
        %v1085 = vadd.f32 %v1077, %v1043
        %v1086 = vadd.f32 %v1078, %v1048
        %v1087 = vadd.f32 %v1079, %v1053
        %v1088 = vadd.f32 %v1080, %v1058
        %v1089 = vadd.f32 %v1081, %v1063
        %v1090 = vadd.f32 %v1082, %v1068
        %v1091 = vadd.f32 %v1083, %v1073
        %1092 = vst.msk [vmem:[#allocation2] sm:$0xff] %vm231, %v1084
        %1093 = vst.msk [vmem:[#allocation2 + $0x8] sm:$0xff] %vm231, %v1085
        %1094 = vst.msk [vmem:[#allocation2 + $0x10] sm:$0xff] %vm231, %v1086
        %1095 = vst.msk [vmem:[#allocation2 + $0x18] sm:$0xff] %vm231, %v1087
        %1096 = vst.msk [vmem:[#allocation2 + $0x20] sm:$0xff] %vm231, %v1088
        %1097 = vst.msk [vmem:[#allocation2 + $0x28] sm:$0xff] %vm231, %v1089
        %1098 = vst.msk [vmem:[#allocation2 + $0x30] sm:$0xff] %vm231, %v1090
        %1099 = vst.msk [vmem:[#allocation2 + $0x38] sm:$0xff] %vm231, %v1091
        %v1100 = vld [vmem:[#allocation2] sm:$0xff]
        %v1101 = vld [vmem:[#allocation2 + $0x8] sm:$0xff]
        %v1102 = vld [vmem:[#allocation2 + $0x10] sm:$0xff]
        %v1103 = vld [vmem:[#allocation2 + $0x18] sm:$0xff]
        %v1104 = vld [vmem:[#allocation2 + $0x20] sm:$0xff]
        %v1105 = vld [vmem:[#allocation2 + $0x28] sm:$0xff]
        %v1106 = vld [vmem:[#allocation2 + $0x30] sm:$0xff]
        %v1107 = vld [vmem:[#allocation2 + $0x38] sm:$0xff]
        %v1108 = vmax.f32 %v1100, 0.0
        %v1109 = vmax.f32 %v1101, 0.0
        %v1110 = vmax.f32 %v1102, 0.0
        %v1111 = vmax.f32 %v1103, 0.0
        %v1112 = vmax.f32 %v1104, 0.0
        %v1113 = vmax.f32 %v1105, 0.0
        %v1114 = vmax.f32 %v1106, 0.0
        %v1115 = vmax.f32 %v1107, 0.0
        %s1116 = scalar_lea.vmem %s1, 32
        %v1117 = vld [vmem:[%s1116] sm:$0xff]
        %v1118 = vld [vmem:[%s1116 + $0x8] sm:$0xff]
        %v1119 = vld [vmem:[%s1116 + $0x10] sm:$0xff]
        %v1120 = vld [vmem:[%s1116 + $0x18] sm:$0xff]
        %v1122 = vsel %vm231, %v1108, 0
        %v1125 = vsel %vm231, %v1109, 0
        %v1128 = vsel %vm231, %v1110, 0
        %v1131 = vsel %vm231, %v1111, 0
        %v1134 = vsel %vm231, %v1112, 0
        %v1137 = vsel %vm231, %v1113, 0
        %v1140 = vsel %vm231, %v1114, 0
        %v1143 = vsel %vm231, %v1115, 0
        %1145 = vmatprep.subr.mxu0 0.0
        %1146 = vmatpush1.msra.mxu0 %v1117
        %1147 = vmatprep.subr.mxu0 0.0
        %1148 = vmatpush1.msra.mxu0 %v1118
        %1149 = vmatprep.subr.mxu0 0.0
        %1150 = vmatpush1.msra.mxu0 %v1119
        %1151 = vmatprep.subr.mxu0 0.0
        %1152 = vmatpush1.msra.mxu0 %v1120
        %1153 = vmatprep.subr.mxu0 0.0
        %1154 = vmatpush1.msra.mxu0 0.0
        %1155 = vmatprep.subr.mxu0 0.0
        %1156 = vmatpush1.msra.mxu0 0.0
        %1157 = vmatprep.subr.mxu0 0.0
        %1158 = vmatpush1.msra.mxu0 0.0
        %1159 = vmatprep.subr.mxu0 0.0
        %1160 = vmatpush1.msra.mxu0 0.0
        %1161 = vmatprep.subr.mxu0 0.0
        %1162 = vmatpush1.msra.mxu0 0.0
        %1163 = vmatprep.subr.mxu0 0.0
        %1164 = vmatpush1.msra.mxu0 0.0
        %1165 = vmatprep.subr.mxu0 0.0
        %1166 = vmatpush1.msra.mxu0 0.0
        %1167 = vmatprep.subr.mxu0 0.0
        %1168 = vmatpush1.msra.mxu0 0.0
        %1169 = vmatprep.subr.mxu0 0.0
        %1170 = vmatpush1.msra.mxu0 0.0
        %1171 = vmatprep.subr.mxu0 0.0
        %1172 = vmatpush1.msra.mxu0 0.0
        %1173 = vmatprep.subr.mxu0 0.0
        %1174 = vmatpush1.msra.mxu0 0.0
        %1175 = vmatprep.subr.mxu0 0.0
        %1176 = vmatpush1.msra.mxu0 0.0
        %1177 = vmatprep.subr.mxu0 0.0
        %1178 = vmatpush1.msra.mxu0 0.0
        %1179 = vmatprep.subr.mxu0 0.0
        %1180 = vmatpush1.msra.mxu0 0.0
        %1181 = vmatprep.subr.mxu0 0.0
        %1182 = vmatpush1.msra.mxu0 0.0
        %1183 = vmatprep.subr.mxu0 0.0
        %1184 = vmatpush1.msra.mxu0 0.0
        %1185 = vmatprep.subr.mxu0 0.0
        %1186 = vmatpush1.msra.mxu0 0.0
        %1187 = vmatprep.subr.mxu0 0.0
        %1188 = vmatpush1.msra.mxu0 0.0
        %1189 = vmatprep.subr.mxu0 0.0
        %1190 = vmatpush1.msra.mxu0 0.0
        %1191 = vmatprep.subr.mxu0 0.0
        %1192 = vmatpush1.msra.mxu0 0.0
        %1193 = vmatprep.subr.mxu0 0.0
        %1194 = vmatpush1.msra.mxu0 0.0
        %1195 = vmatprep.subr.mxu0 0.0
        %1196 = vmatpush1.msra.mxu0 0.0
        %1197 = vmatprep.subr.mxu0 0.0
        %1198 = vmatpush1.msra.mxu0 0.0
        %1199 = vmatprep.subr.mxu0 0.0
        %1200 = vmatpush1.msra.mxu0 0.0
        %1201 = vmatprep.subr.mxu0 0.0
        %1202 = vmatpush1.msra.mxu0 0.0
        %1203 = vmatprep.subr.mxu0 0.0
        %1204 = vmatpush1.msra.mxu0 0.0
        %1205 = vmatprep.subr.mxu0 0.0
        %1206 = vmatpush1.msra.mxu0 0.0
        %1207 = vmatprep.subr.mxu0 0.0
        %1208 = vmatpush1.msra.mxu0 0.0
        %1209 = vmatprep.mubr.f32.mxu0 0.0
        %1210 = vmatmul.mubr.f32.gmra.mrb[0].mxu0 %v1122
        %v1211 = vpop.f32.mrb[0].mxu0
        %v1212 = vadd.f32 0.0, %v1211
        %v1213 = vpop.f32.mrb[0].mxu0
        %1214 = vmatprep.mubr.f32.mxu0 0.0
        %1215 = vmatmul.mubr.f32.gmra.mrb[0].mxu0 %v1125
        %v1216 = vpop.f32.mrb[0].mxu0
        %v1217 = vadd.f32 0.0, %v1216
        %v1218 = vpop.f32.mrb[0].mxu0
        %1219 = vmatprep.mubr.f32.mxu0 0.0
        %1220 = vmatmul.mubr.f32.gmra.mrb[0].mxu0 %v1128
        %v1221 = vpop.f32.mrb[0].mxu0
        %v1222 = vadd.f32 0.0, %v1221
        %v1223 = vpop.f32.mrb[0].mxu0
        %1224 = vmatprep.mubr.f32.mxu0 0.0
        %1225 = vmatmul.mubr.f32.gmra.mrb[0].mxu0 %v1131
        %v1226 = vpop.f32.mrb[0].mxu0
        %v1227 = vadd.f32 0.0, %v1226
        %v1228 = vpop.f32.mrb[0].mxu0
        %1229 = vmatprep.mubr.f32.mxu0 0.0
        %1230 = vmatmul.mubr.f32.gmra.mrb[0].mxu0 %v1134
        %v1231 = vpop.f32.mrb[0].mxu0
        %v1232 = vadd.f32 0.0, %v1231
        %v1233 = vpop.f32.mrb[0].mxu0
        %1234 = vmatprep.mubr.f32.mxu0 0.0
        %1235 = vmatmul.mubr.f32.gmra.mrb[0].mxu0 %v1137
        %v1236 = vpop.f32.mrb[0].mxu0
        %v1237 = vadd.f32 0.0, %v1236
        %v1238 = vpop.f32.mrb[0].mxu0
        %1239 = vmatprep.mubr.f32.mxu0 0.0
        %1240 = vmatmul.mubr.f32.gmra.mrb[0].mxu0 %v1140
        %v1241 = vpop.f32.mrb[0].mxu0
        %v1242 = vadd.f32 0.0, %v1241
        %v1243 = vpop.f32.mrb[0].mxu0
        %1244 = vmatprep.mubr.f32.mxu0 0.0
        %1245 = vmatmul.mubr.f32.gmra.mrb[0].mxu0 %v1143
        %v1246 = vpop.f32.mrb[0].mxu0
        %v1247 = vadd.f32 0.0, %v1246
        %v1248 = vpop.f32.mrb[0].mxu0
        %1249 = vdwg.mxu0
        %1250 = vst.msk [vmem:[#allocation3 + $0x10] sm:$0xff] %vm240, %v1212
        %1251 = vst.msk [vmem:[#allocation3 + $0x18] sm:$0xff] %vm240, %v1217
        %1252 = vst.msk [vmem:[#allocation3 + $0x20] sm:$0xff] %vm240, %v1222
        %1253 = vst.msk [vmem:[#allocation3 + $0x28] sm:$0xff] %vm240, %v1227
        %1254 = vst.msk [vmem:[#allocation3 + $0x30] sm:$0xff] %vm240, %v1232
        %1255 = vst.msk [vmem:[#allocation3 + $0x38] sm:$0xff] %vm240, %v1237
        %1256 = vst.msk [vmem:[#allocation3 + $0x40] sm:$0xff] %vm240, %v1242
        %1257 = vst.msk [vmem:[#allocation3 + $0x48] sm:$0xff] %vm240, %v1247
        %v1258 = vld [vmem:[#allocation3 + $0x7] sm:$0xff]
        %v1259 = vld [vmem:[#allocation3 + $0xf] sm:$0xff]
        %v1260 = vld [vmem:[#allocation3 + $0x17] sm:$0xff]
        %v1261 = vld [vmem:[#allocation3 + $0x1f] sm:$0xff]
        %v1262 = vld [vmem:[#allocation3 + $0x27] sm:$0xff]
        %v1263 = vld [vmem:[#allocation3 + $0x2f] sm:$0xff]
        %v1264 = vld [vmem:[#allocation3 + $0x37] sm:$0xff]
        %v1265 = vld [vmem:[#allocation3 + $0x3f] sm:$0xff]
        %v1266 = vsel %vm358, %v1258, 0.0
        %v1267 = vsel %vm359, %v1259, 0.0
        %v1268 = vsel %vm360, %v1260, 0.0
        %v1269 = vsel %vm361, %v1261, 0.0
        %v1270 = vsel %vm362, %v1262, 0.0
        %v1271 = vsel %vm363, %v1263, 0.0
        %v1272 = vsel %vm364, %v1264, 0.0
        %v1273 = vsel %vm365, %v1265, 0.0
        %v1274 = vld [vmem:[#allocation3 + $0x8] sm:$0xff]
        %v1275 = vld [vmem:[#allocation3 + $0x10] sm:$0xff]
        %v1276 = vld [vmem:[#allocation3 + $0x18] sm:$0xff]
        %v1277 = vld [vmem:[#allocation3 + $0x20] sm:$0xff]
        %v1278 = vld [vmem:[#allocation3 + $0x28] sm:$0xff]
        %v1279 = vld [vmem:[#allocation3 + $0x30] sm:$0xff]
        %v1280 = vld [vmem:[#allocation3 + $0x38] sm:$0xff]
        %v1281 = vld [vmem:[#allocation3 + $0x40] sm:$0xff]
        %1290 = vrot.lane.b32.xlu0 %v1274, 120
        %v1291 = vpop.permute.xlu0 %1290
        %1292 = vrot.lane.b32.xlu0 %v1275, 120
        %v1293 = vpop.permute.xlu0 %1292
        %1294 = vrot.lane.b32.xlu0 %v1276, 120
        %v1295 = vpop.permute.xlu0 %1294
        %1296 = vrot.lane.b32.xlu0 %v1277, 120
        %v1297 = vpop.permute.xlu0 %1296
        %1298 = vrot.lane.b32.xlu0 %v1278, 120
        %v1299 = vpop.permute.xlu0 %1298
        %1300 = vrot.lane.b32.xlu0 %v1279, 120
        %v1301 = vpop.permute.xlu0 %1300
        %1302 = vrot.lane.b32.xlu0 %v1280, 120
        %v1303 = vpop.permute.xlu0 %1302
        %1304 = vrot.lane.b32.xlu0 %v1281, 120
        %v1305 = vpop.permute.xlu0 %1304
        %v1314 = vadd.f32 %v1266, %v1291
        %v1315 = vadd.f32 %v1267, %v1293
        %v1316 = vadd.f32 %v1268, %v1295
        %v1317 = vadd.f32 %v1269, %v1297
        %v1318 = vadd.f32 %v1270, %v1299
        %v1319 = vadd.f32 %v1271, %v1301
        %v1320 = vadd.f32 %v1272, %v1303
        %v1321 = vadd.f32 %v1273, %v1305
        %v1322 = vld [vmem:[#allocation3 + $0x9] sm:$0xff]
        %v1323 = vld [vmem:[#allocation3 + $0x11] sm:$0xff]
        %v1324 = vld [vmem:[#allocation3 + $0x19] sm:$0xff]
        %v1325 = vld [vmem:[#allocation3 + $0x21] sm:$0xff]
        %v1326 = vld [vmem:[#allocation3 + $0x29] sm:$0xff]
        %v1327 = vld [vmem:[#allocation3 + $0x31] sm:$0xff]
        %v1328 = vld [vmem:[#allocation3 + $0x39] sm:$0xff]
        %v1329 = vld [vmem:[#allocation3 + $0x41] sm:$0xff]
        %v1330 = vsel %vm366, %v1322, 0.0
        %v1331 = vsel %vm367, %v1323, 0.0
        %v1332 = vsel %vm368, %v1324, 0.0
        %v1333 = vsel %vm369, %v1325, 0.0
        %v1334 = vsel %vm370, %v1326, 0.0
        %v1335 = vsel %vm371, %v1327, 0.0
        %v1336 = vsel %vm372, %v1328, 0.0
        %v1337 = vsel %vm373, %v1329, 0.0
        %1346 = vrot.lane.b32.xlu0 %v1330, 112
        %v1347 = vpop.permute.xlu0 %1346
        %1348 = vrot.lane.b32.xlu0 %v1331, 112
        %v1349 = vpop.permute.xlu0 %1348
        %1350 = vrot.lane.b32.xlu0 %v1332, 112
        %v1351 = vpop.permute.xlu0 %1350
        %1352 = vrot.lane.b32.xlu0 %v1333, 112
        %v1353 = vpop.permute.xlu0 %1352
        %1354 = vrot.lane.b32.xlu0 %v1334, 112
        %v1355 = vpop.permute.xlu0 %1354
        %1356 = vrot.lane.b32.xlu0 %v1335, 112
        %v1357 = vpop.permute.xlu0 %1356
        %1358 = vrot.lane.b32.xlu0 %v1336, 112
        %v1359 = vpop.permute.xlu0 %1358
        %1360 = vrot.lane.b32.xlu0 %v1337, 112
        %v1361 = vpop.permute.xlu0 %1360
        %v1370 = vadd.f32 %v1314, %v1347
        %v1371 = vadd.f32 %v1315, %v1349
        %v1372 = vadd.f32 %v1316, %v1351
        %v1373 = vadd.f32 %v1317, %v1353
        %v1374 = vadd.f32 %v1318, %v1355
        %v1375 = vadd.f32 %v1319, %v1357
        %v1376 = vadd.f32 %v1320, %v1359
        %v1377 = vadd.f32 %v1321, %v1361
        %v1378 = vld [vmem:[#allocation3 + $0x47] sm:$0xff]
        %v1379 = vsel %vm358, %v1259, 0.0
        %v1380 = vsel %vm359, %v1260, 0.0
        %v1381 = vsel %vm360, %v1261, 0.0
        %v1382 = vsel %vm361, %v1262, 0.0
        %v1383 = vsel %vm362, %v1263, 0.0
        %v1384 = vsel %vm363, %v1264, 0.0
        %v1385 = vsel %vm364, %v1265, 0.0
        %v1386 = vsel %vm365, %v1378, 0.0
        %1395 = vrot.lane.b32.xlu0 %v1379, 104
        %v1396 = vpop.permute.xlu0 %1395
        %1397 = vrot.lane.b32.xlu0 %v1380, 104
        %v1398 = vpop.permute.xlu0 %1397
        %1399 = vrot.lane.b32.xlu0 %v1381, 104
        %v1400 = vpop.permute.xlu0 %1399
        %1401 = vrot.lane.b32.xlu0 %v1382, 104
        %v1402 = vpop.permute.xlu0 %1401
        %1403 = vrot.lane.b32.xlu0 %v1383, 104
        %v1404 = vpop.permute.xlu0 %1403
        %1405 = vrot.lane.b32.xlu0 %v1384, 104
        %v1406 = vpop.permute.xlu0 %1405
        %1407 = vrot.lane.b32.xlu0 %v1385, 104
        %v1408 = vpop.permute.xlu0 %1407
        %1409 = vrot.lane.b32.xlu0 %v1386, 104
        %v1410 = vpop.permute.xlu0 %1409
        %v1419 = vadd.f32 %v1370, %v1396
        %v1420 = vadd.f32 %v1371, %v1398
        %v1421 = vadd.f32 %v1372, %v1400
        %v1422 = vadd.f32 %v1373, %v1402
        %v1423 = vadd.f32 %v1374, %v1404
        %v1424 = vadd.f32 %v1375, %v1406
        %v1425 = vadd.f32 %v1376, %v1408
        %v1426 = vadd.f32 %v1377, %v1410
        %v1427 = vld [vmem:[#allocation3 + $0x48] sm:$0xff]
        %1429 = vrot.lane.b32.xlu0 %v1275, 96
        %v1430 = vpop.permute.xlu0 %1429
        %1431 = vrot.lane.b32.xlu0 %v1276, 96
        %v1432 = vpop.permute.xlu0 %1431
        %1433 = vrot.lane.b32.xlu0 %v1277, 96
        %v1434 = vpop.permute.xlu0 %1433
        %1435 = vrot.lane.b32.xlu0 %v1278, 96
        %v1436 = vpop.permute.xlu0 %1435
        %1437 = vrot.lane.b32.xlu0 %v1279, 96
        %v1438 = vpop.permute.xlu0 %1437
        %1439 = vrot.lane.b32.xlu0 %v1280, 96
        %v1440 = vpop.permute.xlu0 %1439
        %1441 = vrot.lane.b32.xlu0 %v1281, 96
        %v1442 = vpop.permute.xlu0 %1441
        %1443 = vrot.lane.b32.xlu0 %v1427, 96
        %v1444 = vpop.permute.xlu0 %1443
        %v1453 = vadd.f32 %v1419, %v1430
        %v1454 = vadd.f32 %v1420, %v1432
        %v1455 = vadd.f32 %v1421, %v1434
        %v1456 = vadd.f32 %v1422, %v1436
        %v1457 = vadd.f32 %v1423, %v1438
        %v1458 = vadd.f32 %v1424, %v1440
        %v1459 = vadd.f32 %v1425, %v1442
        %v1460 = vadd.f32 %v1426, %v1444
        %v1461 = vld [vmem:[#allocation3 + $0x49] sm:$0xff]
        %v1462 = vsel %vm366, %v1323, 0.0
        %v1463 = vsel %vm367, %v1324, 0.0
        %v1464 = vsel %vm368, %v1325, 0.0
        %v1465 = vsel %vm369, %v1326, 0.0
        %v1466 = vsel %vm370, %v1327, 0.0
        %v1467 = vsel %vm371, %v1328, 0.0
        %v1468 = vsel %vm372, %v1329, 0.0
        %v1469 = vsel %vm373, %v1461, 0.0
        %1478 = vrot.lane.b32.xlu0 %v1462, 88
        %v1479 = vpop.permute.xlu0 %1478
        %1480 = vrot.lane.b32.xlu0 %v1463, 88
        %v1481 = vpop.permute.xlu0 %1480
        %1482 = vrot.lane.b32.xlu0 %v1464, 88
        %v1483 = vpop.permute.xlu0 %1482
        %1484 = vrot.lane.b32.xlu0 %v1465, 88
        %v1485 = vpop.permute.xlu0 %1484
        %1486 = vrot.lane.b32.xlu0 %v1466, 88
        %v1487 = vpop.permute.xlu0 %1486
        %1488 = vrot.lane.b32.xlu0 %v1467, 88
        %v1489 = vpop.permute.xlu0 %1488
        %1490 = vrot.lane.b32.xlu0 %v1468, 88
        %v1491 = vpop.permute.xlu0 %1490
        %1492 = vrot.lane.b32.xlu0 %v1469, 88
        %v1493 = vpop.permute.xlu0 %1492
        %v1502 = vadd.f32 %v1453, %v1479
        %v1503 = vadd.f32 %v1454, %v1481
        %v1504 = vadd.f32 %v1455, %v1483
        %v1505 = vadd.f32 %v1456, %v1485
        %v1506 = vadd.f32 %v1457, %v1487
        %v1507 = vadd.f32 %v1458, %v1489
        %v1508 = vadd.f32 %v1459, %v1491
        %v1509 = vadd.f32 %v1460, %v1493
        %v1510 = vld [vmem:[#allocation3 + $0x4f] sm:$0xff]
        %v1511 = vsel %vm358, %v1260, 0.0
        %v1512 = vsel %vm359, %v1261, 0.0
        %v1513 = vsel %vm360, %v1262, 0.0
        %v1514 = vsel %vm361, %v1263, 0.0
        %v1515 = vsel %vm362, %v1264, 0.0
        %v1516 = vsel %vm363, %v1265, 0.0
        %v1517 = vsel %vm364, %v1378, 0.0
        %v1518 = vsel %vm365, %v1510, 0.0
        %1527 = vrot.lane.b32.xlu0 %v1511, 80
        %v1528 = vpop.permute.xlu0 %1527
        %1529 = vrot.lane.b32.xlu0 %v1512, 80
        %v1530 = vpop.permute.xlu0 %1529
        %1531 = vrot.lane.b32.xlu0 %v1513, 80
        %v1532 = vpop.permute.xlu0 %1531
        %1533 = vrot.lane.b32.xlu0 %v1514, 80
        %v1534 = vpop.permute.xlu0 %1533
        %1535 = vrot.lane.b32.xlu0 %v1515, 80
        %v1536 = vpop.permute.xlu0 %1535
        %1537 = vrot.lane.b32.xlu0 %v1516, 80
        %v1538 = vpop.permute.xlu0 %1537
        %1539 = vrot.lane.b32.xlu0 %v1517, 80
        %v1540 = vpop.permute.xlu0 %1539
        %1541 = vrot.lane.b32.xlu0 %v1518, 80
        %v1542 = vpop.permute.xlu0 %1541
        %v1551 = vadd.f32 %v1502, %v1528
        %v1552 = vadd.f32 %v1503, %v1530
        %v1553 = vadd.f32 %v1504, %v1532
        %v1554 = vadd.f32 %v1505, %v1534
        %v1555 = vadd.f32 %v1506, %v1536
        %v1556 = vadd.f32 %v1507, %v1538
        %v1557 = vadd.f32 %v1508, %v1540
        %v1558 = vadd.f32 %v1509, %v1542
        %v1559 = vld [vmem:[#allocation3 + $0x50] sm:$0xff]
        %1561 = vrot.lane.b32.xlu0 %v1276, 72
        %v1562 = vpop.permute.xlu0 %1561
        %1563 = vrot.lane.b32.xlu0 %v1277, 72
        %v1564 = vpop.permute.xlu0 %1563
        %1565 = vrot.lane.b32.xlu0 %v1278, 72
        %v1566 = vpop.permute.xlu0 %1565
        %1567 = vrot.lane.b32.xlu0 %v1279, 72
        %v1568 = vpop.permute.xlu0 %1567
        %1569 = vrot.lane.b32.xlu0 %v1280, 72
        %v1570 = vpop.permute.xlu0 %1569
        %1571 = vrot.lane.b32.xlu0 %v1281, 72
        %v1572 = vpop.permute.xlu0 %1571
        %1573 = vrot.lane.b32.xlu0 %v1427, 72
        %v1574 = vpop.permute.xlu0 %1573
        %1575 = vrot.lane.b32.xlu0 %v1559, 72
        %v1576 = vpop.permute.xlu0 %1575
        %v1585 = vadd.f32 %v1551, %v1562
        %v1586 = vadd.f32 %v1552, %v1564
        %v1587 = vadd.f32 %v1553, %v1566
        %v1588 = vadd.f32 %v1554, %v1568
        %v1589 = vadd.f32 %v1555, %v1570
        %v1590 = vadd.f32 %v1556, %v1572
        %v1591 = vadd.f32 %v1557, %v1574
        %v1592 = vadd.f32 %v1558, %v1576
        %v1593 = vld [vmem:[#allocation3 + $0x51] sm:$0xff]
        %v1594 = vsel %vm366, %v1324, 0.0
        %v1595 = vsel %vm367, %v1325, 0.0
        %v1596 = vsel %vm368, %v1326, 0.0
        %v1597 = vsel %vm369, %v1327, 0.0
        %v1598 = vsel %vm370, %v1328, 0.0
        %v1599 = vsel %vm371, %v1329, 0.0
        %v1600 = vsel %vm372, %v1461, 0.0
        %v1601 = vsel %vm373, %v1593, 0.0
        %1610 = vrot.lane.b32.xlu0 %v1594, 64
        %v1611 = vpop.permute.xlu0 %1610
        %1612 = vrot.lane.b32.xlu0 %v1595, 64
        %v1613 = vpop.permute.xlu0 %1612
        %1614 = vrot.lane.b32.xlu0 %v1596, 64
        %v1615 = vpop.permute.xlu0 %1614
        %1616 = vrot.lane.b32.xlu0 %v1597, 64
        %v1617 = vpop.permute.xlu0 %1616
        %1618 = vrot.lane.b32.xlu0 %v1598, 64
        %v1619 = vpop.permute.xlu0 %1618
        %1620 = vrot.lane.b32.xlu0 %v1599, 64
        %v1621 = vpop.permute.xlu0 %1620
        %1622 = vrot.lane.b32.xlu0 %v1600, 64
        %v1623 = vpop.permute.xlu0 %1622
        %1624 = vrot.lane.b32.xlu0 %v1601, 64
        %v1625 = vpop.permute.xlu0 %1624
        %v1634 = vadd.f32 %v1585, %v1611
        %v1635 = vadd.f32 %v1586, %v1613
        %v1636 = vadd.f32 %v1587, %v1615
        %v1637 = vadd.f32 %v1588, %v1617
        %v1638 = vadd.f32 %v1589, %v1619
        %v1639 = vadd.f32 %v1590, %v1621
        %v1640 = vadd.f32 %v1591, %v1623
        %v1641 = vadd.f32 %v1592, %v1625
        %s1642 = scalar_lea.vmem %s2, 1
        %v1643 = vld [vmem:[%s1642] sm:$0x1]
        %v1645 = vlaneseq
        %v1646 = vshrl.u32 %v1645, 7
        %v1647 = vsub.s32 0, %v1646
        %v1648 = vrot.slane %v1643, %v1647
        %v1650 = vadd.f32 %v1634, %v1648
        %v1651 = vadd.f32 %v1635, %v1648
        %v1652 = vadd.f32 %v1636, %v1648
        %v1653 = vadd.f32 %v1637, %v1648
        %v1654 = vadd.f32 %v1638, %v1648
        %v1655 = vadd.f32 %v1639, %v1648
        %v1656 = vadd.f32 %v1640, %v1648
        %v1657 = vadd.f32 %v1641, %v1648
        %v1658 = vmax.f32 %v1650, 0.0
        %v1659 = vmax.f32 %v1651, 0.0
        %v1660 = vmax.f32 %v1652, 0.0
        %v1661 = vmax.f32 %v1653, 0.0
        %v1662 = vmax.f32 %v1654, 0.0
        %v1663 = vmax.f32 %v1655, 0.0
        %v1664 = vmax.f32 %v1656, 0.0
        %v1665 = vmax.f32 %v1657, 0.0
        %s1666 = scalar_lea.vmem %s3, 8
        %v1667 = vld [vmem:[%s1666] sm:$0xff]
        %s1668 = scalar_lea.vmem %s4, 1
        %v1669 = vld [vmem:[%s1668] sm:$0x1]
        %v1671 = vlaneseq
        %v1672 = vshrl.u32 %v1671, 7
        %v1673 = vsub.s32 0, %v1672
        %v1674 = vrot.slane %v1669, %v1673
        %v1677 = vsel %vm946, %v1658, 0
        %v1680 = vsel %vm946, %v1659, 0
        %v1683 = vsel %vm946, %v1660, 0
        %v1686 = vsel %vm946, %v1661, 0
        %v1689 = vsel %vm946, %v1662, 0
        %v1692 = vsel %vm946, %v1663, 0
        %v1695 = vsel %vm946, %v1664, 0
        %v1698 = vsel %vm946, %v1665, 0
        %1700 = vmatprep.subr.mxu0 0.0
        %1701 = vmatpush1.msra.mxu0 %v1667
        %1702 = vmatprep.subr.mxu0 0.0
        %1703 = vmatpush1.msra.mxu0 0.0
        %1704 = vmatprep.subr.mxu0 0.0
        %1705 = vmatpush1.msra.mxu0 0.0
        %1706 = vmatprep.subr.mxu0 0.0
        %1707 = vmatpush1.msra.mxu0 0.0
        %1708 = vmatprep.subr.mxu0 0.0
        %1709 = vmatpush1.msra.mxu0 0.0
        %1710 = vmatprep.subr.mxu0 0.0
        %1711 = vmatpush1.msra.mxu0 0.0
        %1712 = vmatprep.subr.mxu0 0.0
        %1713 = vmatpush1.msra.mxu0 0.0
        %1714 = vmatprep.subr.mxu0 0.0
        %1715 = vmatpush1.msra.mxu0 0.0
        %1716 = vmatprep.subr.mxu0 0.0
        %1717 = vmatpush1.msra.mxu0 0.0
        %1718 = vmatprep.subr.mxu0 0.0
        %1719 = vmatpush1.msra.mxu0 0.0
        %1720 = vmatprep.subr.mxu0 0.0
        %1721 = vmatpush1.msra.mxu0 0.0
        %1722 = vmatprep.subr.mxu0 0.0
        %1723 = vmatpush1.msra.mxu0 0.0
        %1724 = vmatprep.subr.mxu0 0.0
        %1725 = vmatpush1.msra.mxu0 0.0
        %1726 = vmatprep.subr.mxu0 0.0
        %1727 = vmatpush1.msra.mxu0 0.0
        %1728 = vmatprep.subr.mxu0 0.0
        %1729 = vmatpush1.msra.mxu0 0.0
        %1730 = vmatprep.subr.mxu0 0.0
        %1731 = vmatpush1.msra.mxu0 0.0
        %1732 = vmatprep.subr.mxu0 0.0
        %1733 = vmatpush1.msra.mxu0 0.0
        %1734 = vmatprep.subr.mxu0 0.0
        %1735 = vmatpush1.msra.mxu0 0.0
        %1736 = vmatprep.subr.mxu0 0.0
        %1737 = vmatpush1.msra.mxu0 0.0
        %1738 = vmatprep.subr.mxu0 0.0
        %1739 = vmatpush1.msra.mxu0 0.0
        %1740 = vmatprep.subr.mxu0 0.0
        %1741 = vmatpush1.msra.mxu0 0.0
        %1742 = vmatprep.subr.mxu0 0.0
        %1743 = vmatpush1.msra.mxu0 0.0
        %1744 = vmatprep.subr.mxu0 0.0
        %1745 = vmatpush1.msra.mxu0 0.0
        %1746 = vmatprep.subr.mxu0 0.0
        %1747 = vmatpush1.msra.mxu0 0.0
        %1748 = vmatprep.subr.mxu0 0.0
        %1749 = vmatpush1.msra.mxu0 0.0
        %1750 = vmatprep.subr.mxu0 0.0
        %1751 = vmatpush1.msra.mxu0 0.0
        %1752 = vmatprep.subr.mxu0 0.0
        %1753 = vmatpush1.msra.mxu0 0.0
        %1754 = vmatprep.subr.mxu0 0.0
        %1755 = vmatpush1.msra.mxu0 0.0
        %1756 = vmatprep.subr.mxu0 0.0
        %1757 = vmatpush1.msra.mxu0 0.0
        %1758 = vmatprep.subr.mxu0 0.0
        %1759 = vmatpush1.msra.mxu0 0.0
        %1760 = vmatprep.subr.mxu0 0.0
        %1761 = vmatpush1.msra.mxu0 0.0
        %1762 = vmatprep.subr.mxu0 0.0
        %1763 = vmatpush1.msra.mxu0 0.0
        %1764 = vmatprep.mubr.f32.mxu0 0.0
        %1765 = vmatmul.mubr.f32.gmra.mrb[0].mxu0 %v1677
        %v1766 = vpop.f32.mrb[0].mxu0
        %v1767 = vadd.f32 %v1674, %v1766
        %v1768 = vpop.f32.mrb[0].mxu0
        %1769 = vmatprep.mubr.f32.mxu0 0.0
        %1770 = vmatmul.mubr.f32.gmra.mrb[0].mxu0 %v1680
        %v1771 = vpop.f32.mrb[0].mxu0
        %v1772 = vadd.f32 %v1674, %v1771
        %v1773 = vpop.f32.mrb[0].mxu0
        %1774 = vmatprep.mubr.f32.mxu0 0.0
        %1775 = vmatmul.mubr.f32.gmra.mrb[0].mxu0 %v1683
        %v1776 = vpop.f32.mrb[0].mxu0
        %v1777 = vadd.f32 %v1674, %v1776
        %v1778 = vpop.f32.mrb[0].mxu0
        %1779 = vmatprep.mubr.f32.mxu0 0.0
        %1780 = vmatmul.mubr.f32.gmra.mrb[0].mxu0 %v1686
        %v1781 = vpop.f32.mrb[0].mxu0
        %v1782 = vadd.f32 %v1674, %v1781
        %v1783 = vpop.f32.mrb[0].mxu0
        %1784 = vmatprep.mubr.f32.mxu0 0.0
        %1785 = vmatmul.mubr.f32.gmra.mrb[0].mxu0 %v1689
        %v1786 = vpop.f32.mrb[0].mxu0
        %v1787 = vadd.f32 %v1674, %v1786
        %v1788 = vpop.f32.mrb[0].mxu0
        %1789 = vmatprep.mubr.f32.mxu0 0.0
        %1790 = vmatmul.mubr.f32.gmra.mrb[0].mxu0 %v1692
        %v1791 = vpop.f32.mrb[0].mxu0
        %v1792 = vadd.f32 %v1674, %v1791
        %v1793 = vpop.f32.mrb[0].mxu0
        %1794 = vmatprep.mubr.f32.mxu0 0.0
        %1795 = vmatmul.mubr.f32.gmra.mrb[0].mxu0 %v1695
        %v1796 = vpop.f32.mrb[0].mxu0
        %v1797 = vadd.f32 %v1674, %v1796
        %v1798 = vpop.f32.mrb[0].mxu0
        %1799 = vmatprep.mubr.f32.mxu0 0.0
        %1800 = vmatmul.mubr.f32.gmra.mrb[0].mxu0 %v1698
        %v1801 = vpop.f32.mrb[0].mxu0
        %v1802 = vadd.f32 %v1674, %v1801
        %v1803 = vpop.f32.mrb[0].mxu0
        %1804 = vdwg.mxu0
        %v1805 = vld [vmem:[#allocation2] sm:$0xff]
        %v1806 = vld [vmem:[#allocation2 + $0x8] sm:$0xff]
        %v1807 = vld [vmem:[#allocation2 + $0x10] sm:$0xff]
        %v1808 = vld [vmem:[#allocation2 + $0x18] sm:$0xff]
        %v1809 = vld [vmem:[#allocation2 + $0x20] sm:$0xff]
        %v1810 = vld [vmem:[#allocation2 + $0x28] sm:$0xff]
        %v1811 = vld [vmem:[#allocation2 + $0x30] sm:$0xff]
        %v1812 = vld [vmem:[#allocation2 + $0x38] sm:$0xff]
        %v1813 = vadd.f32 %v1805, %v1767
        %v1814 = vadd.f32 %v1806, %v1772
        %v1815 = vadd.f32 %v1807, %v1777
        %v1816 = vadd.f32 %v1808, %v1782
        %v1817 = vadd.f32 %v1809, %v1787
        %v1818 = vadd.f32 %v1810, %v1792
        %v1819 = vadd.f32 %v1811, %v1797
        %v1820 = vadd.f32 %v1812, %v1802
        %1821 = vst.msk [vmem:[#allocation2] sm:$0xff] %vm231, %v1813
        %1822 = vst.msk [vmem:[#allocation2 + $0x8] sm:$0xff] %vm231, %v1814
        %1823 = vst.msk [vmem:[#allocation2 + $0x10] sm:$0xff] %vm231, %v1815
        %1824 = vst.msk [vmem:[#allocation2 + $0x18] sm:$0xff] %vm231, %v1816
        %1825 = vst.msk [vmem:[#allocation2 + $0x20] sm:$0xff] %vm231, %v1817
        %1826 = vst.msk [vmem:[#allocation2 + $0x28] sm:$0xff] %vm231, %v1818
        %1827 = vst.msk [vmem:[#allocation2 + $0x30] sm:$0xff] %vm231, %v1819
        %1828 = vst.msk [vmem:[#allocation2 + $0x38] sm:$0xff] %vm231, %v1820
        %v1829 = vld [vmem:[#allocation2] sm:$0xff]
        %v1830 = vld [vmem:[#allocation2 + $0x8] sm:$0xff]
        %v1831 = vld [vmem:[#allocation2 + $0x10] sm:$0xff]
        %v1832 = vld [vmem:[#allocation2 + $0x18] sm:$0xff]
        %v1833 = vld [vmem:[#allocation2 + $0x20] sm:$0xff]
        %v1834 = vld [vmem:[#allocation2 + $0x28] sm:$0xff]
        %v1835 = vld [vmem:[#allocation2 + $0x30] sm:$0xff]
        %v1836 = vld [vmem:[#allocation2 + $0x38] sm:$0xff]
        %v1837 = vmax.f32 %v1829, 0.0
        %v1838 = vmax.f32 %v1830, 0.0
        %v1839 = vmax.f32 %v1831, 0.0
        %v1840 = vmax.f32 %v1832, 0.0
        %v1841 = vmax.f32 %v1833, 0.0
        %v1842 = vmax.f32 %v1834, 0.0
        %v1843 = vmax.f32 %v1835, 0.0
        %v1844 = vmax.f32 %v1836, 0.0
        %1845 = vst.msk [vmem:[%s217] sm:$0xff] %vm231, %v1837
        %1846 = vst.msk [vmem:[%s217 + $0x8] sm:$0xff] %vm231, %v1838
        %1847 = vst.msk [vmem:[%s217 + $0x10] sm:$0xff] %vm231, %v1839
        %1848 = vst.msk [vmem:[%s217 + $0x18] sm:$0xff] %vm231, %v1840
        %1849 = vst.msk [vmem:[%s217 + $0x20] sm:$0xff] %vm231, %v1841
        %1850 = vst.msk [vmem:[%s217 + $0x28] sm:$0xff] %vm231, %v1842
        %1851 = vst.msk [vmem:[%s217 + $0x30] sm:$0xff] %vm231, %v1843
        %1852 = vst.msk [vmem:[%s217 + $0x38] sm:$0xff] %vm231, %v1844
        %s1853 = sand.u32 %s137, 1
        %s1854 = scalar_lea.sflag [#allocation5], %s1853
        %s1855 = sand.u32 %s137, 1
        %s1856 = smul.addr %s1855, 64
        %s1857 = scalar_lea.vmem [#allocation4], %s1856
        // Predicated region
        $region41: #{residual_stack_forward.1} parent=39 // pred_check
          %p1858 = pneg %p147
        $region42: #{residual_stack_forward.1} parent=39 // pred_check_branch
          %1860 = sbr.rel (%p1858) target = $region44
        $region43: #{residual_stack_forward.1} parent=39 // pred_region
          %s1862 = ssub.s32 1024, 1024
          %1863 = vsyncadd %s1854, %s1862
          %s1864 = smul.addr %s19, 8
          %s1865 = smul.addr %s1864, 128
          %s1866 = scalar_lea.hbm %s5, %s1865
          %s1867 = sshll.u32 %s1857, 4
          %s1868 = int_to_ptr.vmem [resolvable:$true] %s1867
          %1873 = dma.vmem_to_hbm [thread:$0]  %s1868, 1024, %s1866, %s1854, 128, 128, 8
        $region44: #{residual_stack_forward.1} parent=39 // pred_fallthru
          _
      $region40: #{residual_stack_forward.1} parent=5 // pred_fallthru
        _
      %p1874 = scmp.le.s32.totalorder 2, %s14
      // Predicated region
      $region45: #{residual_stack_forward.1} parent=5 // pred_check
        %p1875 = pneg %p1874
      $region46: #{residual_stack_forward.1} parent=5 // pred_check_branch
        %1877 = sbr.rel (%p1875) target = $region48
      $region47: #{residual_stack_forward.1} parent=5 // pred_region
        %s1878 = ssub.s32 %s14, 2
        // Predicated region
        $region49: #{residual_stack_forward.1} parent=47 // pred_check
          %p1879 = pneg %p153
        $region50: #{residual_stack_forward.1} parent=47 // pred_check_branch
          %1881 = sbr.rel (%p1879) target = $region52
        $region51: #{residual_stack_forward.1} parent=47 // pred_region
          %s1882 = sand.u32 %s138, 1
          %s1883 = scalar_lea.sflag [#allocation5], %s1882
          %s1884 = sand.u32 %s138, 1
          %s1885 = smul.addr %s1884, 64
          %s1886 = scalar_lea.vmem [#allocation4], %s1885
          %1887 = dma.done %s1883, 1024
        $region52: #{residual_stack_forward.1} parent=47 // pred_fallthru
          _
      $region48: #{residual_stack_forward.1} parent=5 // pred_fallthru
        _
    $region6: #{residual_stack_forward.1} parent=1 // loop_footer
      %s18 = sadd.s32 1, %s14
    $region7: #{residual_stack_forward.1} parent=1 // loop_footer_branch
      %13 = sbr.rel target = $region3
    $region8: #{residual_stack_forward.1} parent=1 // loop_exit
      _
    %1888 = vsyncpa [#allocation5], 1
    %s1889 = scalar_lea.sflag [#allocation5], 1
    %1890 = vsyncpa %s1889, 1

</llo_original>
